<compile_context>
chip_gen: v5e
topology: v5e:2x2
jax: 0.10.0
libtpu: 0.0.40
codegen_flags: <defaults>
</compile_context>

<pallas_src>
import functools
import math
import random

import numpy as np

import jax
import jax.numpy as jnp
from jax.experimental import pallas as pl
from jax.experimental.pallas import tpu as pltpu

PATCH = 16
GRID14 = 14
NUM_PATCHES = GRID14 * GRID14          # 196
PATCH_DIM = PATCH * PATCH * 3          # 768

_PAR1 = pltpu.CompilerParams(dimension_semantics=("parallel",))
_PAR_STACK = pltpu.CompilerParams(dimension_semantics=("parallel", "arbitrary"))


# ----------------------------- in-kernel helpers -----------------------------

def _ln_f32(x, g, b, eps=1e-6):
    mu = jnp.mean(x, axis=-1, keepdims=True)
    var = jnp.mean(jnp.square(x - mu), axis=-1, keepdims=True)
    return (x - mu) * jax.lax.rsqrt(var + eps) * g + b


def _dot_f32(a_bf16, w_bf16):
    return jnp.dot(a_bf16, w_bf16, preferred_element_type=jnp.float32)


# ----------------------------- fused transformer STACK kernel -----------------------------
# grid = (N, depth); output block index constant over depth -> activation stays in VMEM.

def _stack_kernel(*refs, num_heads, has_pos, has_final_norm):
    idx = 0
    x_ref = refs[idx]; idx += 1
    pos_ref = None
    if has_pos:
        pos_ref = refs[idx]; idx += 1
    (ln1_g, ln1_b, wq, bq, wk, bk, wv, bv, wp, bp,
     ln2_g, ln2_b, w1, b1, w2, b2) = refs[idx:idx + 16]
    idx += 16
    fng = fnb = None
    if has_final_norm:
        fng, fnb = refs[idx:idx + 2]
        idx += 2
    o_ref = refs[idx]

    d = pl.program_id(1)

    @pl.when(d == 0)
    def _():
        x0 = x_ref[0].astype(jnp.float32)
        if has_pos:
            x0 = x0 + pos_ref[0].astype(jnp.float32)
        o_ref[0] = x0

    x = o_ref[0]                                            # (S, D) f32, resident
    S, D = x.shape
    H = num_heads
    Dh = D // H
    scale = Dh ** -0.5

    # ---- multi-head self-attention (head-batched, no per-head unroll) ----
    h = _ln_f32(x, ln1_g[0], ln1_b[0])
    hb = jnp.broadcast_to(h.astype(jnp.bfloat16)[None, :, :], (H, S, D))
    dn_proj = (((2,), (1,)), ((0,), (0,)))                  # contract D, batch H
    q = jax.lax.dot_general(hb, wq[0], dn_proj, preferred_element_type=jnp.float32) + bq[0]
    k = jax.lax.dot_general(hb, wk[0], dn_proj, preferred_element_type=jnp.float32) + bk[0]
    v = jax.lax.dot_general(hb, wv[0], dn_proj, preferred_element_type=jnp.float32) + bv[0]

    s = jax.lax.dot_general(q.astype(jnp.bfloat16), k.astype(jnp.bfloat16),
                            (((2,), (2,)), ((0,), (0,))),
                            preferred_element_type=jnp.float32) * scale        # (H,S,S)
    s = s - jnp.max(s, axis=-1, keepdims=True)
    p = jnp.exp(s)
    p = p * pl.reciprocal(jnp.sum(p, axis=-1, keepdims=True), approx=True)

    o = jax.lax.dot_general(p.astype(jnp.bfloat16), v.astype(jnp.bfloat16),
                            (((2,), (1,)), ((0,), (0,))),
                            preferred_element_type=jnp.float32)                # (H,S,Dh)
    # per-head output projection summed over heads == concat(heads) @ W_proj
    proj = jax.lax.dot_general(o.astype(jnp.bfloat16), wp[0],
                               (((2,), (1,)), ((0,), (0,))),
                               preferred_element_type=jnp.float32)             # (H,S,D)
    x = x + jnp.sum(proj, axis=0) + bp[0]

    # ---- MLP ----
    h2 = _ln_f32(x, ln2_g[0], ln2_b[0])
    h2 = _dot_f32(h2.astype(jnp.bfloat16), w1[0]) + b1[0]
    # TODO(synk): PyTorch nn.GELU is erf-exact; tanh approximation used here.
    h2 = jax.nn.gelu(h2, approximate=True)
    h2 = _dot_f32(h2.astype(jnp.bfloat16), w2[0]) + b2[0]
    x = x + h2

    o_ref[0] = x
    if has_final_norm:
        @pl.when(d == pl.num_programs(1) - 1)
        def _():
            o_ref[0] = _ln_f32(x, fng[0], fnb[0])


def _stacked_weight_spec(a):
    zeros = (0,) * (a.ndim - 1)
    return pl.BlockSpec((1,) + a.shape[1:], lambda i, d, z=zeros: (d,) + z)


def stack_pallas(x, sp, num_heads, pos=None, final_norm=None):
    """Whole transformer stack in one pallas_call; grid=(batch, depth)."""
    N, S, D = x.shape
    depth = sp['wq'].shape[0]

    args = [x]
    in_specs = [pl.BlockSpec((1, S, D), lambda i, d: (i, 0, 0))]
    if pos is not None:
        args.append(pos)
        in_specs.append(pl.BlockSpec((1, S, D), lambda i, d: (0, 0, 0)))

    for name in ('ln1_g', 'ln1_b', 'wq', 'bq', 'wk', 'bk', 'wv', 'bv', 'wp', 'bp',
                 'ln2_g', 'ln2_b', 'w1', 'b1', 'w2', 'b2'):
        a = sp[name]
        args.append(a)
        in_specs.append(_stacked_weight_spec(a))

    if final_norm is not None:
        fg, fb = final_norm
        args += [fg.reshape(1, 1, D), fb.reshape(1, 1, D)]
        in_specs += [pl.BlockSpec((1, 1, D), lambda i, d: (0, 0, 0)),
                     pl.BlockSpec((1, 1, D), lambda i, d: (0, 0, 0))]

    kernel = functools.partial(_stack_kernel, num_heads=num_heads,
                               has_pos=pos is not None,
                               has_final_norm=final_norm is not None)
    return pl.pallas_call(
        kernel,
        out_shape=jax.ShapeDtypeStruct((N, S, D), jnp.float32),
        grid=(N, depth),
        in_specs=in_specs,
        out_specs=pl.BlockSpec((1, S, D), lambda i, d: (i, 0, 0)),
        compiler_params=_PAR_STACK,
    )(*args)


# ----------------------------- fused embed / head kernels -----------------------------

def _embed_kernel(tok_ref, pos_ref, cls_ref, w_ref, b_ref, o_ref):
    # Patch-embed (Conv k=s=16 as matmul) + cls token + full pos-embed, all fused.
    y = _dot_f32(tok_ref[0].astype(jnp.bfloat16), w_ref[...]) + b_ref[...]      # (L, D)
    cls = cls_ref[0].astype(jnp.float32)                                        # (1, D)
    full = jnp.concatenate([cls, y], axis=0) + pos_ref[0].astype(jnp.float32)   # (L+1, D)
    o_ref[0] = full.astype(o_ref.dtype)


def patch_embed_pallas(tokens, pos, cls, w, b):
    N, L, K = tokens.shape
    D = w.shape[1]
    return pl.pallas_call(
        _embed_kernel,
        out_shape=jax.ShapeDtypeStruct((N, L + 1, D), jnp.float32),
        grid=(N,),
        in_specs=[
            pl.BlockSpec((1, L, K), lambda i: (i, 0, 0)),
            pl.BlockSpec((1, L + 1, D), lambda i: (0, 0, 0)),
            pl.BlockSpec((1, 1, D), lambda i: (0, 0, 0)),
            pl.BlockSpec((K, D), lambda i: (0, 0)),
            pl.BlockSpec((1, D), lambda i: (0, 0)),
        ],
        out_specs=pl.BlockSpec((1, L + 1, D), lambda i: (i, 0, 0)),
        compiler_params=_PAR1,
    )(tokens, pos, cls, w, b.reshape(1, D))


def _norm_linear_kernel(x_ref, g_ref, b_ref, w_ref, bb_ref, o_ref):
    h = _ln_f32(x_ref[0].astype(jnp.float32), g_ref[...], b_ref[...])
    o_ref[0] = (_dot_f32(h.astype(jnp.bfloat16), w_ref[...]) + bb_ref[...]).astype(o_ref.dtype)


def norm_linear_pallas(x, gamma, beta, w, b):
    """Fused LayerNorm + Linear (invisible-latent norm + decoder_embed)."""
    N, S, D = x.shape
    Dout = w.shape[1]
    return pl.pallas_call(
        _norm_linear_kernel,
        out_shape=jax.ShapeDtypeStruct((N, S, Dout), jnp.float32),
        grid=(N,),
        in_specs=[
            pl.BlockSpec((1, S, D), lambda i: (i, 0, 0)),
            pl.BlockSpec((1, D), lambda i: (0, 0)),
            pl.BlockSpec((1, D), lambda i: (0, 0)),
            pl.BlockSpec((D, Dout), lambda i: (0, 0)),
            pl.BlockSpec((1, Dout), lambda i: (0, 0)),
        ],
        out_specs=pl.BlockSpec((1, S, Dout), lambda i: (i, 0, 0)),
        compiler_params=_PAR1,
    )(x, gamma.reshape(1, D), beta.reshape(1, D), w, b.reshape(1, Dout))


def _linear_seq_kernel(x_ref, w_ref, b_ref, o_ref):
    o_ref[0] = (_dot_f32(x_ref[0].astype(jnp.bfloat16), w_ref[...]) + b_ref[...]).astype(o_ref.dtype)


def linear_seq_pallas(x, w, b):
    N, S, K = x.shape
    Dout = w.shape[1]
    return pl.pallas_call(
        _linear_seq_kernel,
        out_shape=jax.ShapeDtypeStruct((N, S, Dout), jnp.float32),
        grid=(N,),
        in_specs=[
            pl.BlockSpec((1, S, K), lambda i: (i, 0, 0)),
            pl.BlockSpec((K, Dout), lambda i: (0, 0)),
            pl.BlockSpec((1, Dout), lambda i: (0, 0)),
        ],
        out_specs=pl.BlockSpec((1, S, Dout), lambda i: (i, 0, 0)),
        compiler_params=_PAR1,
    )(x, w, b.reshape(1, Dout))


def _vae_head_kernel(x_ref, eps_ref, g_ref, b_ref, mw_ref, mb_ref, vw_ref, vb_ref,
                     z_ref, kld_ref, *, var):
    h = _ln_f32(x_ref[0].astype(jnp.float32), g_ref[...], b_ref[...])
    hb = h.astype(jnp.bfloat16)
    mean = _dot_f32(hb, mw_ref[...]) + mb_ref[...]
    logvar = _dot_f32(hb, vw_ref[...]) + vb_ref[...]
    z_ref[0] = (mean + eps_ref[0].astype(jnp.float32) * jnp.exp(0.5 * logvar)).astype(z_ref.dtype)
    # fused KLD partial sum (per image), finished with a tiny reduction in JAX
    t = math.log(var) - logvar - 1.0 + (mean * mean + jnp.exp(logvar)) * (1.0 / var)
    kld_ref[0] = jnp.sum(t, axis=0, keepdims=True)          # (1, D)


def vae_head_pallas(x, eps, gamma, beta, mu_w, mu_b, var_w, var_b, var):
    """Fused final-norm + mu/logvar heads + reparameterisation + KLD partial."""
    N, S, D = x.shape
    seq = pl.BlockSpec((1, S, D), lambda i: (i, 0, 0))
    vec = pl.BlockSpec((1, D), lambda i: (0, 0))
    mat = pl.BlockSpec((D, D), lambda i: (0, 0))
    return pl.pallas_call(
        functools.partial(_vae_head_kernel, var=float(var)),
        out_shape=(jax.ShapeDtypeStruct((N, S, D), jnp.float32),
                   jax.ShapeDtypeStruct((N, 1, D), jnp.float32)),
        grid=(N,),
        in_specs=[seq, seq, vec, vec, mat, vec, mat, vec],
        out_specs=(seq, pl.BlockSpec((1, 1, D), lambda i: (i, 0, 0))),
        compiler_params=_PAR1,
    )(x, eps, gamma.reshape(1, D), beta.reshape(1, D),
      mu_w, mu_b.reshape(1, D), var_w, var_b.reshape(1, D))


def _pred_head_kernel(x_ref, tgt_ref, g_ref, b_ref, w_ref, bb_ref, pred_ref, mse_ref):
    x = x_ref[0].astype(jnp.float32)                         # (L+1, Dd)
    xp = x[1:, :]                                            # drop cls before the wide matmul
    h = _ln_f32(xp, g_ref[...], b_ref[...])
    p = _dot_f32(h.astype(jnp.bfloat16), w_ref[...]) + bb_ref[...]    # (L, 768), lane-dense
    d = p - tgt_ref[0].astype(jnp.float32)
    mse_ref[0] = jnp.mean(d * d, axis=-1, keepdims=True)     # (L, 1) per-patch MSE
    pred_ref[0] = p.astype(pred_ref.dtype)


def pred_head_pallas(x, target, gamma, beta, w, b):
    """Fused decoder-norm + prediction head + per-patch MSE (loss numerator)."""
    N, S, Dd = x.shape
    L, P = target.shape[1], target.shape[2]
    return pl.pallas_call(
        _pred_head_kernel,
        out_shape=(jax.ShapeDtypeStruct((N, L, P), jnp.float32),
                   jax.ShapeDtypeStruct((N, L, 1), jnp.float32)),
        grid=(N,),
        in_specs=[
            pl.BlockSpec((1, S, Dd), lambda i: (i, 0, 0)),
            pl.BlockSpec((1, L, P), lambda i: (i, 0, 0)),
            pl.BlockSpec((1, Dd), lambda i: (0, 0)),
            pl.BlockSpec((1, Dd), lambda i: (0, 0)),
            pl.BlockSpec((Dd, P), lambda i: (0, 0)),
            pl.BlockSpec((1, P), lambda i: (0, 0)),
        ],
        out_specs=(pl.BlockSpec((1, L, P), lambda i: (i, 0, 0)),
                   pl.BlockSpec((1, L, 1), lambda i: (i, 0, 0))),
        compiler_params=_PAR1,
    )(x, target, gamma.reshape(1, Dd), beta.reshape(1, Dd), w, b.reshape(1, P))


# ----------------------------- model pieces (glue + kernel calls) -----------------------------

def patchify_for_embed(imgs):
    """NCHW -> (N, 196, 768) in (c, ph, pw) order == Conv2d(k=16, s=16) unfold."""
    N, C, H, W = imgs.shape
    h, w = H // PATCH, W // PATCH
    x = imgs.reshape(N, C, h, PATCH, w, PATCH)
    x = jnp.einsum('nchpwq->nhwcpq', x)
    return x.reshape(N, h * w, C * PATCH * PATCH)


def patchify_target(imgs):
    """MAE forward_loss patchify: 'nchpwq->nhwpqc'."""
    N, C, H, W = imgs.shape
    h, w = H // PATCH, W // PATCH
    x = imgs.reshape(N, C, h, PATCH, w, PATCH)
    x = jnp.einsum('nchpwq->nhwpqc', x)
    return x.reshape(N, h * w, PATCH * PATCH * C)


def forward_encoder(params, imgs, mask_ratio, ids_shuffle, num_heads,
                    vae=False, key=None, var=1.0):
    N = imgs.shape[0]
    L = NUM_PATCHES
    len_keep = int(L * (1 - mask_ratio))

    tokens = patchify_for_embed(imgs)                                    # (N, L, 768)
    # patch embed + cls token + full pos-embed fused in one kernel -> (N, L+1, D)
    emb = patch_embed_pallas(tokens, params['pos_embed'], params['cls_token'],
                             params['patch_w_bf'], params['patch_b'])

    # random_masking with forced shuffle order (bookkeeping stays in JAX glue)
    ids_restore = jnp.argsort(ids_shuffle, axis=1).astype(jnp.int32)
    ids_keep = ids_shuffle[:, :len_keep].astype(jnp.int32)
    gather_ids = jnp.concatenate(
        [jnp.zeros((N, 1), jnp.int32), ids_keep + 1], axis=1)            # cls row 0 + kept patches
    x = jnp.take_along_axis(emb, gather_ids[:, :, None], axis=1)         # (N, keep+1, D)

    mask = jnp.ones((N, L), dtype=jnp.float32).at[:, :len_keep].set(0.0)
    mask = jnp.take_along_axis(mask, ids_restore, axis=1)

    if vae:
        x = stack_pallas(x, params['enc_stack'], num_heads)
        eps = jax.random.normal(key, x.shape, dtype=jnp.float32)
        z, kld_partial = vae_head_pallas(
            x, eps, params['norm_g'], params['norm_b'],
            params['mu_w_bf'], params['mu_b'], params['var_w_bf'], params['var_b'],
            var)
        return z, mask, ids_restore, kld_partial

    # final encoder LayerNorm fused into the last depth iteration of the stack kernel
    x = stack_pallas(x, params['enc_stack'], num_heads,
                     final_norm=(params['norm_g'], params['norm_b']))
    return x, mask, ids_restore


def forward_decoder_and_loss(params, x, ids_restore, force_mask_token, num_heads,
                             target, mask):
    x = linear_seq_pallas(x, params['dec_embed_w_bf'], params['dec_embed_b'])   # (N, keep+1, Dd)
    N = x.shape[0]
    L = ids_restore.shape[1]
    Dd = x.shape[-1]
    # force_mask_token already passed through invisible_mae.norm + decoder_embed;
    # drop its cls token so the count matches L + 1 - visible tokens.
    mask_tokens = force_mask_token[:, 1:, :]
    # TODO(synk): this unshuffle gather could be folded into the first decoder-block
    # fetch via PrefetchScalarGridSpec + pl.Element; kept as XLA glue here.
    x_ = jnp.concatenate([x[:, 1:, :], mask_tokens], axis=1)                    # (N, L, Dd)
    x_ = jnp.take_along_axis(
        x_, jnp.broadcast_to(ids_restore[:, :, None], (N, L, Dd)), axis=1)
    x = jnp.concatenate([x[:, :1, :], x_], axis=1)                              # (N, L+1, Dd)

    # decoder stack (dec_pos_embed add folded into depth==0 of the fused stack kernel)
    x = stack_pallas(x, params['dec_stack'], num_heads, pos=params['dec_pos_embed'])

    # fused decoder-norm + prediction head + per-patch MSE
    pred, mse = pred_head_pallas(x, target, params['dec_norm_g'], params['dec_norm_b'],
                                 params['pred_w_bf'], params['pred_b'])          # (N, L, 768)
    recon_loss = jnp.sum(mse[:, :, 0] * mask) / jnp.sum(mask)
    return pred, recon_loss


# ----------------------------- parameter init + kernel-layout prep -----------------------------

def _ninit(key, shape, scale=0.02):
    return scale * jax.random.normal(key, shape, dtype=jnp.float32)


def init_block(key, D, mlp_ratio=4):
    ks = jax.random.split(key, 4)
    H = int(D * mlp_ratio)
    return dict(
        ln1_g=jnp.ones((D,), jnp.float32), ln1_b=jnp.zeros((D,), jnp.float32),
        w_qkv=_ninit(ks[0], (D, 3 * D)), b_qkv=jnp.zeros((3 * D,), jnp.float32),
        w_proj=_ninit(ks[1], (D, D)), b_proj=jnp.zeros((D,), jnp.float32),
        ln2_g=jnp.ones((D,), jnp.float32), ln2_b=jnp.zeros((D,), jnp.float32),
        w_fc1=_ninit(ks[2], (D, H)), b_fc1=jnp.zeros((H,), jnp.float32),
        w_fc2=_ninit(ks[3], (H, D)), b_fc2=jnp.zeros((D,), jnp.float32),
    )


def init_mae(key, *, vae, D=64, depth=2, Dd=64, dec_depth=2):
    keys = jax.random.split(key, 12 + depth + dec_depth)
    p = dict(
        vae=vae,
        patch_w=_ninit(keys[0], (PATCH_DIM, D)), patch_b=jnp.zeros((D,), jnp.float32),
        cls_token=_ninit(keys[1], (1, 1, D)),
        pos_embed=_ninit(keys[2], (1, NUM_PATCHES + 1, D)),
        blocks=[init_block(keys[6 + i], D) for i in range(depth)],
        norm_g=jnp.ones((D,), jnp.float32), norm_b=jnp.zeros((D,), jnp.float32),
        dec_embed_w=_ninit(keys[3], (D, Dd)), dec_embed_b=jnp.zeros((Dd,), jnp.float32),
        mask_token=_ninit(keys[4], (1, 1, Dd)),
        dec_pos_embed=_ninit(keys[5], (1, NUM_PATCHES + 1, Dd)),
        dec_blocks=[init_block(keys[6 + depth + i], Dd) for i in range(dec_depth)],
        dec_norm_g=jnp.ones((Dd,), jnp.float32), dec_norm_b=jnp.zeros((Dd,), jnp.float32),
        pred_w=_ninit(keys[6 + depth + dec_depth], (Dd, PATCH_DIM)),
        pred_b=jnp.zeros((PATCH_DIM,), jnp.float32),
        kld_beta=0.1,
    )
    if vae:
        p['mu_w'] = _ninit(keys[7 + depth + dec_depth], (D, D))
        p['mu_b'] = jnp.zeros((D,), jnp.float32)
        p['var_w'] = _ninit(keys[8 + depth + dec_depth], (D, D))
        p['var_b'] = jnp.zeros((D,), jnp.float32)
    return p


def _stack_blocks(blocks, num_heads):
    """Stack per-depth block weights on a leading axis in kernel-ready layout (bf16 matmul weights)."""
    depth = len(blocks)
    D = blocks[0]['w_qkv'].shape[0]
    H = num_heads
    Dh = D // H
    Hm = blocks[0]['w_fc1'].shape[1]

    def st(name):
        return jnp.stack([b[name] for b in blocks], axis=0)

    w_qkv = st('w_qkv')                                   # (depth, D, 3D)
    b_qkv = st('b_qkv')                                   # (depth, 3D)

    def head_w(sl):   # (depth, H, D, Dh) bf16
        return jnp.transpose(w_qkv[:, :, sl].reshape(depth, D, H, Dh),
                             (0, 2, 1, 3)).astype(jnp.bfloat16)

    def head_b(sl):   # (depth, H, 1, Dh) f32
        return b_qkv[:, sl].reshape(depth, H, 1, Dh)

    return dict(
        ln1_g=st('ln1_g').reshape(depth, 1, D), ln1_b=st('ln1_b').reshape(depth, 1, D),
        wq=head_w(slice(0, D)), bq=head_b(slice(0, D)),
        wk=head_w(slice(D, 2 * D)), bk=head_b(slice(D, 2 * D)),
        wv=head_w(slice(2 * D, 3 * D)), bv=head_b(slice(2 * D, 3 * D)),
        wp=st('w_proj').reshape(depth, H, Dh, D).astype(jnp.bfloat16),
        bp=st('b_proj').reshape(depth, 1, D),
        ln2_g=st('ln2_g').reshape(depth, 1, D), ln2_b=st('ln2_b').reshape(depth, 1, D),
        w1=st('w_fc1').astype(jnp.bfloat16), b1=st('b_fc1').reshape(depth, 1, Hm),
        w2=st('w_fc2').astype(jnp.bfloat16), b2=st('b_fc2').reshape(depth, 1, D),
    )


def prepare_mae(p, num_heads, dec_num_heads):
    q = dict(p)
    q['enc_stack'] = _stack_blocks(p['blocks'], num_heads)
    q['dec_stack'] = _stack_blocks(p['dec_blocks'], dec_num_heads)
    q['patch_w_bf'] = p['patch_w'].astype(jnp.bfloat16)
    q['dec_embed_w_bf'] = p['dec_embed_w'].astype(jnp.bfloat16)
    q['pred_w_bf'] = p['pred_w'].astype(jnp.bfloat16)
    if p['vae']:
        q['mu_w_bf'] = p['mu_w'].astype(jnp.bfloat16)
        q['var_w_bf'] = p['var_w'].astype(jnp.bfloat16)
    return q


# ----------------------------- UncertaintyMAE wrapper -----------------------------

class UncertaintyMAE:
    def __init__(self, visible_params, invisible_params, dropout_ratio=0.0,
                 block_mask_prob=0.5, var=1.0, num_heads=4, dec_num_heads=4, seed=0):
        assert invisible_params['vae']
        assert not visible_params['vae']
        self.visible_mae = prepare_mae(visible_params, num_heads, dec_num_heads)
        self.invisible_mae = prepare_mae(invisible_params, num_heads, dec_num_heads)
        self.dropout_ratio = dropout_ratio
        self.block_mask_prob = block_mask_prob
        self.var = var
        self.num_heads = num_heads
        self.dec_num_heads = dec_num_heads
        self.training = True
        # host-side RNG mirrors the module's `random` / `torch.multinomial` usage
        self.rng = random.Random(seed)
        self.np_rng = np.random.default_rng(seed)

    def block_mask(self, mask_layout):
        random_float = self.rng.random()
        if self.rng.random() < 0.5:
            mask_ratio = 0.75
            if random_float < 0.25:
                mask_layout[0:14, 0:7] = 0; mask_layout[0:7, 7:14] = 0
            elif random_float < 0.5:
                mask_layout[0:14, 0:7] = 0; mask_layout[7:14, 7:14] = 0
            elif random_float < 0.75:
                mask_layout[0:14, 7:14] = 0; mask_layout[0:7, 0:7] = 0
            else:
                mask_layout[0:14, 7:14] = 0; mask_layout[7:14, 0:7] = 0
        else:
            mask_ratio = 0.5
            if random_float < 0.25:
                mask_layout[0:14, 0:7] = 0
            elif random_float < 0.5:
                mask_layout[0:14, 7:14] = 0
            elif random_float < 0.75:
                mask_layout[0:7, 0:14] = 0
            else:
                mask_layout[7:14, 0:14] = 0
        return mask_ratio

    def forward(self, imgs, key, mask_ratio=0.75, force_mask=None, add_default_mask=False):
        N = imgs.shape[0]
        L = 14 * 14
        len_keep = int(L * (1 - mask_ratio))
        len_remove = L - len_keep

        if force_mask is None:
            mask_layout = np.ones((14, 14), dtype=np.float32)
            if self.rng.random() < self.block_mask_prob:
                mask_ratio = self.block_mask(mask_layout)
                mask_layout = mask_layout.flatten()
            else:
                mask_layout = mask_layout.flatten()
                drop = self.np_rng.choice(L, size=len_remove, replace=False)
                mask_layout[drop] = 0
            keep_np = np.where(mask_layout == 1)[0].astype(np.int32)
            mask_np = np.where(mask_layout == 0)[0].astype(np.int32)
            keep_indices = jnp.asarray(np.broadcast_to(keep_np[None, :], (N, keep_np.size)))
            mask_indices = jnp.asarray(np.broadcast_to(mask_np[None, :], (N, mask_np.size)))
        else:
            keep_indices, mask_indices = force_mask

        ids_shuffle = jnp.concatenate([keep_indices, mask_indices], axis=1).astype(jnp.int32)

        visible_latent, mask, ids_restore = forward_encoder(
            self.visible_mae, imgs, mask_ratio, ids_shuffle, self.num_heads, vae=False)

        key_eps, key_sample = jax.random.split(key)
        if self.training and self.rng.random() > self.dropout_ratio:
            ids_reverse_shuffle = jnp.concatenate([mask_indices, keep_indices], axis=1).astype(jnp.int32)
            reverse_mask_ratio = ((1 - mask_ratio) * L - 0.5) / L
            invisible_latent, reverse_mask, _, kld_partial = forward_encoder(
                self.invisible_mae, imgs, reverse_mask_ratio, ids_reverse_shuffle,
                self.num_heads, vae=True, key=key_eps, var=self.var)
            assert invisible_latent.shape[1] + visible_latent.shape[1] == 14 * 14 + 2
            assert invisible_latent.shape[0] == visible_latent.shape[0]
            assert invisible_latent.shape[2] == visible_latent.shape[2]
            # KLD mean finished from the fused per-image partial sums
            kld_loss = 0.5 * jnp.sum(kld_partial) / float(invisible_latent.size)
            _ = self.rng.random()  # mirrors `if random.random() < 0.01: print stats`
        else:
            invisible_num_tokens = 14 * 14 + 2 - visible_latent.shape[1]
            invisible_latent = (self.var ** 0.5) * jax.random.normal(
                key_sample, (visible_latent.shape[0], invisible_num_tokens, visible_latent.shape[2]),
                dtype=jnp.float32)
            kld_loss = 0.0

        # invisible_mae.norm + invisible_mae.decoder_embed fused into one kernel
        invisible_latent = norm_linear_pallas(
            invisible_latent,
            self.invisible_mae['norm_g'], self.invisible_mae['norm_b'],
            self.invisible_mae['dec_embed_w_bf'], self.invisible_mae['dec_embed_b'])

        target = patchify_target(imgs)
        pred, reconstruction_loss = forward_decoder_and_loss(
            self.visible_mae, visible_latent, ids_restore, invisible_latent,
            self.dec_num_heads, target, mask)
        assert pred.shape == (N, L, 16 * 16 * 3), f'pred.shape is {pred.shape}'

        if self.training:
            loss = reconstruction_loss + self.invisible_mae['kld_beta'] * kld_loss
        else:
            loss = reconstruction_loss
        return loss, pred, mask


# ----------------------------- main -----------------------------

if __name__ == "__main__":
    key = jax.random.PRNGKey(0)
    k_vis, k_inv, k_img, k_fwd = jax.random.split(key, 4)

    visible = init_mae(k_vis, vae=False, D=64, depth=2, Dd=64, dec_depth=2)
    invisible = init_mae(k_inv, vae=True, D=64, depth=2, Dd=64, dec_depth=2)

    model = UncertaintyMAE(visible, invisible, dropout_ratio=0.0,
                           block_mask_prob=0.5, var=1.0, num_heads=4, dec_num_heads=4, seed=0)

    # batch=2; image size fixed at 224x224x3 because the module hardcodes 14x14 patches of 16x16x3
    imgs = jax.random.normal(k_img, (2, 3, 224, 224), dtype=jnp.float32)

    loss, pred, mask = model.forward(imgs, k_fwd, mask_ratio=0.75)
    jax.block_until_ready((loss, pred, mask))

    assert pred.shape == (2, 196, 768)
    assert mask.shape == (2, 196)
    assert bool(jnp.isfinite(loss))

    print("KERNEL_OK")
</pallas_src>

<mosaic_0001>
module attributes {stable_mosaic.version = 11 : i64} {
  func.func @_embed_kernel(%arg0: i32, %arg1: memref<1x196x768xf32, #tpu.memory_space<vmem>>, %arg2: memref<1x197x64xf32, #tpu.memory_space<vmem>>, %arg3: memref<1x1x64xf32, #tpu.memory_space<vmem>>, %arg4: memref<768x64xbf16, #tpu.memory_space<vmem>>, %arg5: memref<1x64xf32, #tpu.memory_space<vmem>>, %arg6: memref<1x197x64xf32, #tpu.memory_space<vmem>>) attributes {dimension_semantics = [#tpu.dimension_semantics<parallel>], iteration_bounds = array<i64: 2>, scalar_prefetch = 0 : i64, scratch_operands = 0 : i64, tpu.core_type = #tpu.core_type<tc>, window_params = [{transform_indices = @transform_0, window_bounds = array<i64: 1, 196, 768>}, {pipeline_mode = #tpu.pipeline_mode<synchronous>, transform_indices = @transform_1, window_bounds = array<i64: 1, 197, 64>}, {pipeline_mode = #tpu.pipeline_mode<synchronous>, transform_indices = @transform_2, window_bounds = array<i64: 1, 1, 64>}, {pipeline_mode = #tpu.pipeline_mode<synchronous>, transform_indices = @transform_3, window_bounds = array<i64: 768, 64>}, {pipeline_mode = #tpu.pipeline_mode<synchronous>, transform_indices = @transform_4, window_bounds = array<i64: 1, 64>}, {transform_indices = @transform_5, window_bounds = array<i64: 1, 197, 64>}]} {
    %c0 = arith.constant 0 : index
    %c0_0 = arith.constant 0 : index
    %c0_1 = arith.constant 0 : index
    %0 = vector.load %arg1[%c0, %c0_0, %c0_1] : memref<1x196x768xf32, #tpu.memory_space<vmem>>, vector<1x196x768xf32>
    %1 = vector.shape_cast %0 : vector<1x196x768xf32> to vector<196x768xf32>
    %2 = arith.truncf %1 : vector<196x768xf32> to vector<196x768xbf16>
    %c0_2 = arith.constant 0 : index
    %c0_3 = arith.constant 0 : index
    %3 = vector.load %arg4[%c0_2, %c0_3] : memref<768x64xbf16, #tpu.memory_space<vmem>>, vector<768x64xbf16>
    %cst = arith.constant dense<0.000000e+00> : vector<196x64xf32>
    %4 = tpu.matmul %2, %3, %cst {dimension_numbers = #tpu.dot_dimension_numbers<[1], [0], [0], [1], [0, 0, 1, 1], [], []>} : vector<196x768xbf16>, vector<768x64xbf16>, vector<196x64xf32> -> vector<196x64xf32>
    %c0_4 = arith.constant 0 : index
    %c0_5 = arith.constant 0 : index
    %5 = vector.load %arg5[%c0_4, %c0_5] : memref<1x64xf32, #tpu.memory_space<vmem>>, vector<1x64xf32>
    %6 = vector.broadcast %5 : vector<1x64xf32> to vector<196x64xf32>
    %7 = arith.addf %4, %6 : vector<196x64xf32>
    %c0_6 = arith.constant 0 : index
    %c0_7 = arith.constant 0 : index
    %c0_8 = arith.constant 0 : index
    %8 = vector.load %arg3[%c0_6, %c0_7, %c0_8] : memref<1x1x64xf32, #tpu.memory_space<vmem>>, vector<1x1x64xf32>
    %9 = vector.shape_cast %8 : vector<1x1x64xf32> to vector<1x64xf32>
    %10 = tpu.concatenate %9, %7 in 0 : vector<1x64xf32>, vector<196x64xf32> -> vector<197x64xf32>
    %c0_9 = arith.constant 0 : index
    %c0_10 = arith.constant 0 : index
    %c0_11 = arith.constant 0 : index
    %11 = vector.load %arg2[%c0_9, %c0_10, %c0_11] : memref<1x197x64xf32, #tpu.memory_space<vmem>>, vector<1x197x64xf32>
    %12 = vector.shape_cast %11 : vector<1x197x64xf32> to vector<197x64xf32>
    %13 = arith.addf %10, %12 : vector<197x64xf32>
    %c0_12 = arith.constant 0 : index
    %c0_13 = arith.constant 0 : index
    %c0_14 = arith.constant 0 : index
    %14 = vector.load %arg6[%c0_12, %c0_13, %c0_14] : memref<1x197x64xf32, #tpu.memory_space<vmem>>, vector<1x197x64xf32>
    %15 = vector.shape_cast %14 : vector<1x197x64xf32> to vector<197x64xf32>
    %16 = vector.shape_cast %13 : vector<197x64xf32> to vector<1x197x64xf32>
    tpu.vector_store %arg6[%c0_12, %c0_13, %c0_14], %16 {strides = array<i32>} : memref<1x197x64xf32, #tpu.memory_space<vmem>>, vector<1x197x64xf32>,
    return
  }
  func.func @transform_0(%arg0: i32) -> (i32, i32, i32) {
    %c0_i32 = arith.constant 0 : i32
    %c0_i32_0 = arith.constant 0 : i32
    %c0_i32_1 = arith.constant 0 : i32
    return %arg0, %c0_i32, %c0_i32_0 : i32, i32, i32
  }
  func.func @transform_1(%arg0: i32) -> (i32, i32, i32) {
    %c0_i32 = arith.constant 0 : i32
    %c0_i32_0 = arith.constant 0 : i32
    %c0_i32_1 = arith.constant 0 : i32
    %c0_i32_2 = arith.constant 0 : i32
    return %c0_i32, %c0_i32_0, %c0_i32_1 : i32, i32, i32
  }
  func.func @transform_2(%arg0: i32) -> (i32, i32, i32) {
    %c0_i32 = arith.constant 0 : i32
    %c0_i32_0 = arith.constant 0 : i32
    %c0_i32_1 = arith.constant 0 : i32
    %c0_i32_2 = arith.constant 0 : i32
    return %c0_i32, %c0_i32_0, %c0_i32_1 : i32, i32, i32
  }
  func.func @transform_3(%arg0: i32) -> (i32, i32) {
    %c0_i32 = arith.constant 0 : i32
    %c0_i32_0 = arith.constant 0 : i32
    %c0_i32_1 = arith.constant 0 : i32
    return %c0_i32, %c0_i32_0 : i32, i32
  }
  func.func @transform_4(%arg0: i32) -> (i32, i32) {
    %c0_i32 = arith.constant 0 : i32
    %c0_i32_0 = arith.constant 0 : i32
    %c0_i32_1 = arith.constant 0 : i32
    return %c0_i32, %c0_i32_0 : i32, i32
  }
  func.func @transform_5(%arg0: i32) -> (i32, i32, i32) {
    %c0_i32 = arith.constant 0 : i32
    %c0_i32_0 = arith.constant 0 : i32
    %c0_i32_1 = arith.constant 0 : i32
    return %arg0, %c0_i32, %c0_i32_0 : i32, i32, i32
  }
}

</mosaic_0001>

<llo_original>
// kernel: tpu_custom_call.1
$region0: #{tpu_custom_call.1}
  #allocation0 [shape = 'u32[]', space=smem, size = 0x4, offset = 0x4, fixed_abs, tag = 'smem constant byte address 0x4 - core index']
  #allocation1 [shape = 'u32[72,128]{1,0:T(1,128)}', space=vmem, size = 0x9000, scoped, tag = 'internal scratch']
  %s0 = inlined_call_operand.vmem [shape: f32[2,196,768], index: 0, kind: input, shape index: {}]
  %s1 = inlined_call_operand.vmem [shape: f32[1,197,64], index: 1, kind: input, shape index: {}]
  %s2 = inlined_call_operand.vmem [shape: f32[1,1,64], index: 2, kind: input, shape index: {}]
  %s3 = inlined_call_operand.vmem [shape: bf16[768,64], index: 3, kind: input, shape index: {}]
  %s4 = inlined_call_operand.vmem [shape: f32[1,64], index: 4, kind: input, shape index: {}]
  %s5 = inlined_call_operand.vmem [shape: f32[2,197,64], index: 5, kind: output, shape index: {}]
  %s6 = sld [smem:[#allocation0]]
  $region53: #{tpu_custom_call.1} parent=0
    _
  %s8 = ssub.s32 1, %s6
  %s9 = scalar_select 0, %s8, %s6
  loop: start=0, step=1, limit=4
  $region2: #{tpu_custom_call.1} parent=0 // loop_pre_header
    _
  $region3: #{tpu_custom_call.1} parent=0 // loop_header
    %s11 = sphi 0, %s15
    %p12 = scmp.ge.s32.totalorder %s11, 4
    %s21 = sphi 0, %s23
    %s24 = sphi 0, %s21
    %s25 = sphi 0, %s24
    %s41 = sphi 0, %s25
    %s45 = sphi 0, %s45
    %s47 = sphi 0, %s45
    %s48 = sphi 0, %s47
    %s62 = sphi 0, %s48
    %s66 = sphi 0, %s66
    %s68 = sphi 0, %s66
    %s69 = sphi 0, %s68
    %s83 = sphi 0, %s69
    %s87 = sphi 0, %s87
    %s89 = sphi 0, %s87
    %s90 = sphi 0, %s89
    %s104 = sphi 0, %s90
    %s108 = sphi 0, %s108
    %s110 = sphi 0, %s108
    %s111 = sphi 0, %s110
    %s125 = sphi 0, %s111
    %s131 = sphi 0, %s133
    %s134 = sphi 0, %s131
    %s135 = sphi 0, %s134
    %s151 = sphi 0, %s135
  $region4: #{tpu_custom_call.1} parent=0 // loop_header_branch
    %14 = sbr.rel (%p12) target = $region8
  $region5: #{tpu_custom_call.1} parent=0 // loop_body
    %s16 = ssub.s32 %s11, 1
    %s17 = ssub.s32 %s11, 2
    %s18 = sadd.s32 %s11, 1
    %s19 = ssub.s32 %s11, %s18
    %p20 = scmp.eq.s32.totalorder %s19, 0
    %s22 = sadd.s32 %s21, 1
    %s23 = scalar_select %p20, %s21, %s22
    %p26 = pneg %p20
    %p27 = scmp.eq.s32.totalorder %s11, 1
    %p28 = por %p26, %p27
    %p29 = scmp.ne.s32.totalorder %s21, %s24
    %p30 = scmp.eq.s32.totalorder %s11, 0
    %p31 = por %p29, %p30
    %p32 = scmp.ne.s32.totalorder %s21, %s24
    %p33 = scmp.eq.s32.totalorder %s16, 1
    %p34 = por %p32, %p33
    %p35 = scmp.ne.s32.totalorder %s24, %s25
    %p36 = scmp.eq.s32.totalorder %s16, 0
    %p37 = por %p35, %p36
    %p38 = scmp.ne.s32.totalorder %s24, %s25
    %p39 = scmp.eq.s32.totalorder %s17, 1
    %p40 = por %p38, %p39
    %p42 = scmp.ne.s32.totalorder %s25, %s41
    %p43 = scmp.eq.s32.totalorder %s17, 0
    %p44 = por %p42, %p43
    %s46 = sadd.s32 %s45, 1
    %p49 = scmp.eq.s32.totalorder %s11, 1
    %p50 = scmp.ne.s32.totalorder %s45, %s47
    %p51 = scmp.eq.s32.totalorder %s11, 0
    %p52 = por %p50, %p51
    %p53 = scmp.ne.s32.totalorder %s45, %s47
    %p54 = scmp.eq.s32.totalorder %s16, 1
    %p55 = por %p53, %p54
    %p56 = scmp.ne.s32.totalorder %s47, %s48
    %p57 = scmp.eq.s32.totalorder %s16, 0
    %p58 = por %p56, %p57
    %p59 = scmp.ne.s32.totalorder %s47, %s48
    %p60 = scmp.eq.s32.totalorder %s17, 1
    %p61 = por %p59, %p60
    %p63 = scmp.ne.s32.totalorder %s48, %s62
    %p64 = scmp.eq.s32.totalorder %s17, 0
    %p65 = por %p63, %p64
    %s67 = sadd.s32 %s66, 1
    %p70 = scmp.eq.s32.totalorder %s11, 1
    %p71 = scmp.ne.s32.totalorder %s66, %s68
    %p72 = scmp.eq.s32.totalorder %s11, 0
    %p73 = por %p71, %p72
    %p74 = scmp.ne.s32.totalorder %s66, %s68
    %p75 = scmp.eq.s32.totalorder %s16, 1
    %p76 = por %p74, %p75
    %p77 = scmp.ne.s32.totalorder %s68, %s69
    %p78 = scmp.eq.s32.totalorder %s16, 0
    %p79 = por %p77, %p78
    %p80 = scmp.ne.s32.totalorder %s68, %s69
    %p81 = scmp.eq.s32.totalorder %s17, 1
    %p82 = por %p80, %p81
    %p84 = scmp.ne.s32.totalorder %s69, %s83
    %p85 = scmp.eq.s32.totalorder %s17, 0
    %p86 = por %p84, %p85
    %s88 = sadd.s32 %s87, 1
    %p91 = scmp.eq.s32.totalorder %s11, 1
    %p92 = scmp.ne.s32.totalorder %s87, %s89
    %p93 = scmp.eq.s32.totalorder %s11, 0
    %p94 = por %p92, %p93
    %p95 = scmp.ne.s32.totalorder %s87, %s89
    %p96 = scmp.eq.s32.totalorder %s16, 1
    %p97 = por %p95, %p96
    %p98 = scmp.ne.s32.totalorder %s89, %s90
    %p99 = scmp.eq.s32.totalorder %s16, 0
    %p100 = por %p98, %p99
    %p101 = scmp.ne.s32.totalorder %s89, %s90
    %p102 = scmp.eq.s32.totalorder %s17, 1
    %p103 = por %p101, %p102
    %p105 = scmp.ne.s32.totalorder %s90, %s104
    %p106 = scmp.eq.s32.totalorder %s17, 0
    %p107 = por %p105, %p106
    %s109 = sadd.s32 %s108, 1
    %p112 = scmp.eq.s32.totalorder %s11, 1
    %p113 = scmp.ne.s32.totalorder %s108, %s110
    %p114 = scmp.eq.s32.totalorder %s11, 0
    %p115 = por %p113, %p114
    %p116 = scmp.ne.s32.totalorder %s108, %s110
    %p117 = scmp.eq.s32.totalorder %s16, 1
    %p118 = por %p116, %p117
    %p119 = scmp.ne.s32.totalorder %s110, %s111
    %p120 = scmp.eq.s32.totalorder %s16, 0
    %p121 = por %p119, %p120
    %p122 = scmp.ne.s32.totalorder %s110, %s111
    %p123 = scmp.eq.s32.totalorder %s17, 1
    %p124 = por %p122, %p123
    %p126 = scmp.ne.s32.totalorder %s111, %s125
    %p127 = scmp.eq.s32.totalorder %s17, 0
    %p128 = por %p126, %p127
    %s129 = ssub.s32 %s11, %s18
    %p130 = scmp.eq.s32.totalorder %s129, 0
    %s132 = sadd.s32 %s131, 1
    %s133 = scalar_select %p130, %s131, %s132
    %p136 = pneg %p130
    %p137 = scmp.eq.s32.totalorder %s11, 1
    %p138 = por %p136, %p137
    %p139 = scmp.ne.s32.totalorder %s131, %s134
    %p140 = scmp.eq.s32.totalorder %s11, 0
    %p141 = por %p139, %p140
    %p142 = scmp.ne.s32.totalorder %s131, %s134
    %p143 = scmp.eq.s32.totalorder %s16, 1
    %p144 = por %p142, %p143
    %p145 = scmp.ne.s32.totalorder %s134, %s135
    %p146 = scmp.eq.s32.totalorder %s16, 0
    %p147 = por %p145, %p146
    %p148 = scmp.ne.s32.totalorder %s134, %s135
    %p149 = scmp.eq.s32.totalorder %s17, 1
    %p150 = por %p148, %p149
    %p152 = scmp.ne.s32.totalorder %s135, %s151
    %p153 = scmp.eq.s32.totalorder %s17, 0
    %p154 = por %p152, %p153
    %p155 = scmp.le.s32.totalorder 1, %s11
    %p156 = scmp.lt.s32.totalorder %s11, 3
    %p157 = pnand %p155, %p156
    %p158 = pneg %p157
    // Predicated region
    $region9: #{tpu_custom_call.1} parent=5 // pred_check
      _
    $region10: #{tpu_custom_call.1} parent=5 // pred_check_branch
      %160 = sbr.rel (%p157) target = $region12
    $region11: #{tpu_custom_call.1} parent=5 // pred_region
      %s161 = ssub.s32 %s11, 1
      // Predicated region
      $region13: #{tpu_custom_call.1} parent=11 // pred_check
        %p162 = pneg %p58
      $region14: #{tpu_custom_call.1} parent=11 // pred_check_branch
        %164 = sbr.rel (%p162) target = $region16
      $region15: #{tpu_custom_call.1} parent=11 // pred_region
        _
      $region16: #{tpu_custom_call.1} parent=11 // pred_fallthru
        _
      // Predicated region
      $region17: #{tpu_custom_call.1} parent=11 // pred_check
        %p165 = pneg %p79
      $region18: #{tpu_custom_call.1} parent=11 // pred_check_branch
        %167 = sbr.rel (%p165) target = $region20
      $region19: #{tpu_custom_call.1} parent=11 // pred_region
        _
      $region20: #{tpu_custom_call.1} parent=11 // pred_fallthru
        _
      // Predicated region
      $region21: #{tpu_custom_call.1} parent=11 // pred_check
        %p168 = pneg %p100
      $region22: #{tpu_custom_call.1} parent=11 // pred_check_branch
        %170 = sbr.rel (%p168) target = $region24
      $region23: #{tpu_custom_call.1} parent=11 // pred_region
        _
      $region24: #{tpu_custom_call.1} parent=11 // pred_fallthru
        _
      // Predicated region
      $region25: #{tpu_custom_call.1} parent=11 // pred_check
        %p171 = pneg %p121
      $region26: #{tpu_custom_call.1} parent=11 // pred_check_branch
        %173 = sbr.rel (%p171) target = $region28
      $region27: #{tpu_custom_call.1} parent=11 // pred_region
        _
      $region28: #{tpu_custom_call.1} parent=11 // pred_fallthru
        _
    $region12: #{tpu_custom_call.1} parent=5 // pred_fallthru
      _
    %p174 = scmp.lt.s32.totalorder %s11, 2
    // Predicated region
    $region29: #{tpu_custom_call.1} parent=5 // pred_check
      %p175 = pneg %p174
    $region30: #{tpu_custom_call.1} parent=5 // pred_check_branch
      %177 = sbr.rel (%p175) target = $region32
    $region31: #{tpu_custom_call.1} parent=5 // pred_region
      // Predicated region
      $region33: #{tpu_custom_call.1} parent=31 // pred_check
        %p178 = pneg %p31
      $region34: #{tpu_custom_call.1} parent=31 // pred_check_branch
        %180 = sbr.rel (%p178) target = $region36
      $region35: #{tpu_custom_call.1} parent=31 // pred_region
        %p181 = scmp.lt.s32.totalorder %s11, 1
        %s182 = scalar_select %p181, %s11, 1
        %s183 = smul.addr %s182, 150
        %s184 = smul.addr %s183, 8
        %s185 = scalar_lea.vmem %s0, %s184
      $region36: #{tpu_custom_call.1} parent=31 // pred_fallthru
        _
    $region32: #{tpu_custom_call.1} parent=5 // pred_fallthru
      _
    %p186 = scmp.le.s32.totalorder 1, %s11
    %p187 = scmp.lt.s32.totalorder %s11, 3
    %p188 = pnand %p186, %p187
    %p189 = pneg %p188
    // Predicated region
    $region37: #{tpu_custom_call.1} parent=5 // pred_check
      _
    $region38: #{tpu_custom_call.1} parent=5 // pred_check_branch
      %191 = sbr.rel (%p188) target = $region40
    $region39: #{tpu_custom_call.1} parent=5 // pred_region
      %s192 = ssub.s32 %s11, 1
      %p193 = scmp.lt.s32.totalorder %s16, 1
      %s194 = scalar_select %p193, %s16, 1
      %s195 = smul.addr %s194, 150
      %s196 = smul.addr %s195, 8
      %s197 = scalar_lea.vmem %s0, %s196
      %p198 = pneg %p37
      %p199 = pneg %p34
      %p200 = pneg %p58
      %p201 = pneg %p55
      %p202 = pneg %p79
      %p203 = pneg %p76
      %p204 = pneg %p100
      %p205 = pneg %p97
      %p206 = pneg %p121
      %p207 = pneg %p118
      %p208 = pneg %p147
      %p209 = pneg %p144
      %p210 = scmp.lt.s32.totalorder %s16, 1
      %s211 = scalar_select %p210, %s16, 1
      %s212 = smul.addr %s211, 25
      %s213 = smul.addr %s212, 8
      %s214 = scalar_lea.vmem %s5, %s213
      %p215 = scmp.lt.s32.totalorder %s16, 1
      %s216 = scalar_select %p215, %s16, 1
      %s217 = smul.addr %s216, 150
      %s218 = smul.addr %s217, 8
      %s219 = scalar_lea.vmem %s0, %s218
      %p220 = scmp.lt.s32.totalorder %s16, 1
      %s221 = scalar_select %p220, %s16, 1
      %s222 = smul.addr %s221, 25
      %s223 = smul.addr %s222, 8
      %s224 = scalar_lea.vmem %s5, %s223
      %v225 = vld [vmem:[%s219] sm:$0xff]
      %v226 = vld [vmem:[%s219 + $0x8] sm:$0xff]
      %v227 = vld [vmem:[%s219 + $0x10] sm:$0xff]
      %v228 = vld [vmem:[%s219 + $0x18] sm:$0xff]
      %v229 = vld [vmem:[%s219 + $0x20] sm:$0xff]
      %v230 = vld [vmem:[%s219 + $0x28] sm:$0xff]
      %v231 = vld [vmem:[%s219 + $0x30] sm:$0xff]
      %v232 = vld [vmem:[%s219 + $0x38] sm:$0xff]
      %v233 = vld [vmem:[%s219 + $0x40] sm:$0xff]
      %v234 = vld [vmem:[%s219 + $0x48] sm:$0xff]
      %v235 = vld [vmem:[%s219 + $0x50] sm:$0xff]
      %v236 = vld [vmem:[%s219 + $0x58] sm:$0xff]
      %v237 = vld [vmem:[%s219 + $0x60] sm:$0xff]
      %v238 = vld [vmem:[%s219 + $0x68] sm:$0xff]
      %v239 = vld [vmem:[%s219 + $0x70] sm:$0xff]
      %v240 = vld [vmem:[%s219 + $0x78] sm:$0xff]
      %v241 = vld [vmem:[%s219 + $0x80] sm:$0xff]
      %v242 = vld [vmem:[%s219 + $0x88] sm:$0xff]
      %v243 = vld [vmem:[%s219 + $0x90] sm:$0xff]
      %v244 = vld [vmem:[%s219 + $0x98] sm:$0xff]
      %v245 = vld [vmem:[%s219 + $0xa0] sm:$0xff]
      %v246 = vld [vmem:[%s219 + $0xa8] sm:$0xff]
      %v247 = vld [vmem:[%s219 + $0xb0] sm:$0xff]
      %v248 = vld [vmem:[%s219 + $0xb8] sm:$0xff]
      %v249 = vld [vmem:[%s219 + $0xc0] sm:$0xff]
      %v250 = vld [vmem:[%s219 + $0xc8] sm:$0xff]
      %v251 = vld [vmem:[%s219 + $0xd0] sm:$0xff]
      %v252 = vld [vmem:[%s219 + $0xd8] sm:$0xff]
      %v253 = vld [vmem:[%s219 + $0xe0] sm:$0xff]
      %v254 = vld [vmem:[%s219 + $0xe8] sm:$0xff]
      %v255 = vld [vmem:[%s219 + $0xf0] sm:$0xff]
      %v256 = vld [vmem:[%s219 + $0xf8] sm:$0xff]
      %v257 = vld [vmem:[%s219 + $0x100] sm:$0xff]
      %v258 = vld [vmem:[%s219 + $0x108] sm:$0xff]
      %v259 = vld [vmem:[%s219 + $0x110] sm:$0xff]
      %v260 = vld [vmem:[%s219 + $0x118] sm:$0xff]
      %v261 = vld [vmem:[%s219 + $0x120] sm:$0xff]
      %v262 = vld [vmem:[%s219 + $0x128] sm:$0xff]
      %v263 = vld [vmem:[%s219 + $0x130] sm:$0xff]
      %v264 = vld [vmem:[%s219 + $0x138] sm:$0xff]
      %v265 = vld [vmem:[%s219 + $0x140] sm:$0xff]
      %v266 = vld [vmem:[%s219 + $0x148] sm:$0xff]
      %v267 = vld [vmem:[%s219 + $0x150] sm:$0xff]
      %v268 = vld [vmem:[%s219 + $0x158] sm:$0xff]
      %v269 = vld [vmem:[%s219 + $0x160] sm:$0xff]
      %v270 = vld [vmem:[%s219 + $0x168] sm:$0xff]
      %v271 = vld [vmem:[%s219 + $0x170] sm:$0xff]
      %v272 = vld [vmem:[%s219 + $0x178] sm:$0xff]
      %v273 = vld [vmem:[%s219 + $0x180] sm:$0xff]
      %v274 = vld [vmem:[%s219 + $0x188] sm:$0xff]
      %v275 = vld [vmem:[%s219 + $0x190] sm:$0xff]
      %v276 = vld [vmem:[%s219 + $0x198] sm:$0xff]
      %v277 = vld [vmem:[%s219 + $0x1a0] sm:$0xff]
      %v278 = vld [vmem:[%s219 + $0x1a8] sm:$0xff]
      %v279 = vld [vmem:[%s219 + $0x1b0] sm:$0xff]
      %v280 = vld [vmem:[%s219 + $0x1b8] sm:$0xff]
      %v281 = vld [vmem:[%s219 + $0x1c0] sm:$0xff]
      %v282 = vld [vmem:[%s219 + $0x1c8] sm:$0xff]
      %v283 = vld [vmem:[%s219 + $0x1d0] sm:$0xff]
      %v284 = vld [vmem:[%s219 + $0x1d8] sm:$0xff]
      %v285 = vld [vmem:[%s219 + $0x1e0] sm:$0xff]
      %v286 = vld [vmem:[%s219 + $0x1e8] sm:$0xff]
      %v287 = vld [vmem:[%s219 + $0x1f0] sm:$0xff]
      %v288 = vld [vmem:[%s219 + $0x1f8] sm:$0xff]
      %v289 = vld [vmem:[%s219 + $0x200] sm:$0xff]
      %v290 = vld [vmem:[%s219 + $0x208] sm:$0xff]
      %v291 = vld [vmem:[%s219 + $0x210] sm:$0xff]
      %v292 = vld [vmem:[%s219 + $0x218] sm:$0xff]
      %v293 = vld [vmem:[%s219 + $0x220] sm:$0xff]
      %v294 = vld [vmem:[%s219 + $0x228] sm:$0xff]
      %v295 = vld [vmem:[%s219 + $0x230] sm:$0xff]
      %v296 = vld [vmem:[%s219 + $0x238] sm:$0xff]
      %v297 = vld [vmem:[%s219 + $0x240] sm:$0xff]
      %v298 = vld [vmem:[%s219 + $0x248] sm:$0xff]
      %v299 = vld [vmem:[%s219 + $0x250] sm:$0xff]
      %v300 = vld [vmem:[%s219 + $0x258] sm:$0xff]
      %v301 = vld [vmem:[%s219 + $0x260] sm:$0xff]
      %v302 = vld [vmem:[%s219 + $0x268] sm:$0xff]
      %v303 = vld [vmem:[%s219 + $0x270] sm:$0xff]
      %v304 = vld [vmem:[%s219 + $0x278] sm:$0xff]
      %v305 = vld [vmem:[%s219 + $0x280] sm:$0xff]
      %v306 = vld [vmem:[%s219 + $0x288] sm:$0xff]
      %v307 = vld [vmem:[%s219 + $0x290] sm:$0xff]
      %v308 = vld [vmem:[%s219 + $0x298] sm:$0xff]
      %v309 = vld [vmem:[%s219 + $0x2a0] sm:$0xff]
      %v310 = vld [vmem:[%s219 + $0x2a8] sm:$0xff]
      %v311 = vld [vmem:[%s219 + $0x2b0] sm:$0xff]
      %v312 = vld [vmem:[%s219 + $0x2b8] sm:$0xff]
      %v313 = vld [vmem:[%s219 + $0x2c0] sm:$0xff]
      %v314 = vld [vmem:[%s219 + $0x2c8] sm:$0xff]
      %v315 = vld [vmem:[%s219 + $0x2d0] sm:$0xff]
      %v316 = vld [vmem:[%s219 + $0x2d8] sm:$0xff]
      %v317 = vld [vmem:[%s219 + $0x2e0] sm:$0xff]
      %v318 = vld [vmem:[%s219 + $0x2e8] sm:$0xff]
      %v319 = vld [vmem:[%s219 + $0x2f0] sm:$0xff]
      %v320 = vld [vmem:[%s219 + $0x2f8] sm:$0xff]
      %v321 = vld [vmem:[%s219 + $0x300] sm:$0xff]
      %v322 = vld [vmem:[%s219 + $0x308] sm:$0xff]
      %v323 = vld [vmem:[%s219 + $0x310] sm:$0xff]
      %v324 = vld [vmem:[%s219 + $0x318] sm:$0xff]
      %v325 = vld [vmem:[%s219 + $0x320] sm:$0xff]
      %v326 = vld [vmem:[%s219 + $0x328] sm:$0xff]
      %v327 = vld [vmem:[%s219 + $0x330] sm:$0xff]
      %v328 = vld [vmem:[%s219 + $0x338] sm:$0xff]
      %v329 = vld [vmem:[%s219 + $0x340] sm:$0xff]
      %v330 = vld [vmem:[%s219 + $0x348] sm:$0xff]
      %v331 = vld [vmem:[%s219 + $0x350] sm:$0xff]
      %v332 = vld [vmem:[%s219 + $0x358] sm:$0xff]
      %v333 = vld [vmem:[%s219 + $0x360] sm:$0xff]
      %v334 = vld [vmem:[%s219 + $0x368] sm:$0xff]
      %v335 = vld [vmem:[%s219 + $0x370] sm:$0xff]
      %v336 = vld [vmem:[%s219 + $0x378] sm:$0xff]
      %v337 = vld [vmem:[%s219 + $0x380] sm:$0xff]
      %v338 = vld [vmem:[%s219 + $0x388] sm:$0xff]
      %v339 = vld [vmem:[%s219 + $0x390] sm:$0xff]
      %v340 = vld [vmem:[%s219 + $0x398] sm:$0xff]
      %v341 = vld [vmem:[%s219 + $0x3a0] sm:$0xff]
      %v342 = vld [vmem:[%s219 + $0x3a8] sm:$0xff]
      %v343 = vld [vmem:[%s219 + $0x3b0] sm:$0xff]
      %v344 = vld [vmem:[%s219 + $0x3b8] sm:$0xff]
      %v345 = vld [vmem:[%s219 + $0x3c0] sm:$0xff]
      %v346 = vld [vmem:[%s219 + $0x3c8] sm:$0xff]
      %v347 = vld [vmem:[%s219 + $0x3d0] sm:$0xff]
      %v348 = vld [vmem:[%s219 + $0x3d8] sm:$0xff]
      %v349 = vld [vmem:[%s219 + $0x3e0] sm:$0xff]
      %v350 = vld [vmem:[%s219 + $0x3e8] sm:$0xff]
      %v351 = vld [vmem:[%s219 + $0x3f0] sm:$0xff]
      %v352 = vld [vmem:[%s219 + $0x3f8] sm:$0xff]
      %v353 = vld [vmem:[%s219 + $0x400] sm:$0xff]
      %v354 = vld [vmem:[%s219 + $0x408] sm:$0xff]
      %v355 = vld [vmem:[%s219 + $0x410] sm:$0xff]
      %v356 = vld [vmem:[%s219 + $0x418] sm:$0xff]
      %v357 = vld [vmem:[%s219 + $0x420] sm:$0xff]
      %v358 = vld [vmem:[%s219 + $0x428] sm:$0xff]
      %v359 = vld [vmem:[%s219 + $0x430] sm:$0xff]
      %v360 = vld [vmem:[%s219 + $0x438] sm:$0xff]
      %v361 = vld [vmem:[%s219 + $0x440] sm:$0xff]
      %v362 = vld [vmem:[%s219 + $0x448] sm:$0xff]
      %v363 = vld [vmem:[%s219 + $0x450] sm:$0xff]
      %v364 = vld [vmem:[%s219 + $0x458] sm:$0xff]
      %v365 = vld [vmem:[%s219 + $0x460] sm:$0xff]
      %v366 = vld [vmem:[%s219 + $0x468] sm:$0xff]
      %v367 = vld [vmem:[%s219 + $0x470] sm:$0xff]
      %v368 = vld [vmem:[%s219 + $0x478] sm:$0xff]
      %v369 = vld [vmem:[%s219 + $0x480] sm:$0xf]
      %v370 = vld [vmem:[%s219 + $0x488] sm:$0xf]
      %v371 = vld [vmem:[%s219 + $0x490] sm:$0xf]
      %v372 = vld [vmem:[%s219 + $0x498] sm:$0xf]
      %v373 = vld [vmem:[%s219 + $0x4a0] sm:$0xf]
      %v374 = vld [vmem:[%s219 + $0x4a8] sm:$0xf]
      %v375 = vpack.c.bf16 %v231, %v225
      %v376 = vpack.c.bf16 %v232, %v226
      %v377 = vpack.c.bf16 %v233, %v227
      %v378 = vpack.c.bf16 %v234, %v228
      %v379 = vpack.c.bf16 %v235, %v229
      %v380 = vpack.c.bf16 %v236, %v230
      %v381 = vpack.c.bf16 %v243, %v237
      %v382 = vpack.c.bf16 %v244, %v238
      %v383 = vpack.c.bf16 %v245, %v239
      %v384 = vpack.c.bf16 %v246, %v240
      %v385 = vpack.c.bf16 %v247, %v241
      %v386 = vpack.c.bf16 %v248, %v242
      %v387 = vpack.c.bf16 %v255, %v249
      %v388 = vpack.c.bf16 %v256, %v250
      %v389 = vpack.c.bf16 %v257, %v251
      %v390 = vpack.c.bf16 %v258, %v252
      %v391 = vpack.c.bf16 %v259, %v253
      %v392 = vpack.c.bf16 %v260, %v254
      %v393 = vpack.c.bf16 %v267, %v261
      %v394 = vpack.c.bf16 %v268, %v262
      %v395 = vpack.c.bf16 %v269, %v263
      %v396 = vpack.c.bf16 %v270, %v264
      %v397 = vpack.c.bf16 %v271, %v265
      %v398 = vpack.c.bf16 %v272, %v266
      %v399 = vpack.c.bf16 %v279, %v273
      %v400 = vpack.c.bf16 %v280, %v274
      %v401 = vpack.c.bf16 %v281, %v275
      %v402 = vpack.c.bf16 %v282, %v276
      %v403 = vpack.c.bf16 %v283, %v277
      %v404 = vpack.c.bf16 %v284, %v278
      %v405 = vpack.c.bf16 %v291, %v285
      %v406 = vpack.c.bf16 %v292, %v286
      %v407 = vpack.c.bf16 %v293, %v287
      %v408 = vpack.c.bf16 %v294, %v288
      %v409 = vpack.c.bf16 %v295, %v289
      %v410 = vpack.c.bf16 %v296, %v290
      %v411 = vpack.c.bf16 %v303, %v297
      %v412 = vpack.c.bf16 %v304, %v298
      %v413 = vpack.c.bf16 %v305, %v299
      %v414 = vpack.c.bf16 %v306, %v300
      %v415 = vpack.c.bf16 %v307, %v301
      %v416 = vpack.c.bf16 %v308, %v302
      %v417 = vpack.c.bf16 %v315, %v309
      %v418 = vpack.c.bf16 %v316, %v310
      %v419 = vpack.c.bf16 %v317, %v311
      %v420 = vpack.c.bf16 %v318, %v312
      %v421 = vpack.c.bf16 %v319, %v313
      %v422 = vpack.c.bf16 %v320, %v314
      %v423 = vpack.c.bf16 %v327, %v321
      %v424 = vpack.c.bf16 %v328, %v322
      %v425 = vpack.c.bf16 %v329, %v323
      %v426 = vpack.c.bf16 %v330, %v324
      %v427 = vpack.c.bf16 %v331, %v325
      %v428 = vpack.c.bf16 %v332, %v326
      %v429 = vpack.c.bf16 %v339, %v333
      %v430 = vpack.c.bf16 %v340, %v334
      %v431 = vpack.c.bf16 %v341, %v335
      %v432 = vpack.c.bf16 %v342, %v336
      %v433 = vpack.c.bf16 %v343, %v337
      %v434 = vpack.c.bf16 %v344, %v338
      %v435 = vpack.c.bf16 %v351, %v345
      %v436 = vpack.c.bf16 %v352, %v346
      %v437 = vpack.c.bf16 %v353, %v347
      %v438 = vpack.c.bf16 %v354, %v348
      %v439 = vpack.c.bf16 %v355, %v349
      %v440 = vpack.c.bf16 %v356, %v350
      %v441 = vpack.c.bf16 %v363, %v357
      %v442 = vpack.c.bf16 %v364, %v358
      %v443 = vpack.c.bf16 %v365, %v359
      %v444 = vpack.c.bf16 %v366, %v360
      %v445 = vpack.c.bf16 %v367, %v361
      %v446 = vpack.c.bf16 %v368, %v362
      %v447 = vpack.c.bf16 %v369, %v369
      %v448 = vpack.c.bf16 %v370, %v370
      %v449 = vpack.c.bf16 %v371, %v371
      %v450 = vpack.c.bf16 %v372, %v372
      %v451 = vpack.c.bf16 %v373, %v373
      %v452 = vpack.c.bf16 %v374, %v374
      %v453 = vld [vmem:[%s3] sm:$0xf]
      %v454 = vld [vmem:[%s3 + $0x4] sm:$0xf]
      %v455 = vld [vmem:[%s3 + $0x8] sm:$0xf]
      %v456 = vld [vmem:[%s3 + $0xc] sm:$0xf]
      %v457 = vld [vmem:[%s3 + $0x10] sm:$0xf]
      %v458 = vld [vmem:[%s3 + $0x14] sm:$0xf]
      %v459 = vld [vmem:[%s3 + $0x18] sm:$0xf]
      %v460 = vld [vmem:[%s3 + $0x1c] sm:$0xf]
      %v461 = vld [vmem:[%s3 + $0x20] sm:$0xf]
      %v462 = vld [vmem:[%s3 + $0x24] sm:$0xf]
      %v463 = vld [vmem:[%s3 + $0x28] sm:$0xf]
      %v464 = vld [vmem:[%s3 + $0x2c] sm:$0xf]
      %v465 = vld [vmem:[%s3 + $0x30] sm:$0xf]
      %v466 = vld [vmem:[%s3 + $0x34] sm:$0xf]
      %v467 = vld [vmem:[%s3 + $0x38] sm:$0xf]
      %v468 = vld [vmem:[%s3 + $0x3c] sm:$0xf]
      %v469 = vld [vmem:[%s3 + $0x40] sm:$0xf]
      %v470 = vld [vmem:[%s3 + $0x44] sm:$0xf]
      %v471 = vld [vmem:[%s3 + $0x48] sm:$0xf]
      %v472 = vld [vmem:[%s3 + $0x4c] sm:$0xf]
      %v473 = vld [vmem:[%s3 + $0x50] sm:$0xf]
      %v474 = vld [vmem:[%s3 + $0x54] sm:$0xf]
      %v475 = vld [vmem:[%s3 + $0x58] sm:$0xf]
      %v476 = vld [vmem:[%s3 + $0x5c] sm:$0xf]
      %v477 = vld [vmem:[%s3 + $0x60] sm:$0xf]
      %v478 = vld [vmem:[%s3 + $0x64] sm:$0xf]
      %v479 = vld [vmem:[%s3 + $0x68] sm:$0xf]
      %v480 = vld [vmem:[%s3 + $0x6c] sm:$0xf]
      %v481 = vld [vmem:[%s3 + $0x70] sm:$0xf]
      %v482 = vld [vmem:[%s3 + $0x74] sm:$0xf]
      %v483 = vld [vmem:[%s3 + $0x78] sm:$0xf]
      %v484 = vld [vmem:[%s3 + $0x7c] sm:$0xf]
      %v485 = vld [vmem:[%s3 + $0x80] sm:$0xf]
      %v486 = vld [vmem:[%s3 + $0x84] sm:$0xf]
      %v487 = vld [vmem:[%s3 + $0x88] sm:$0xf]
      %v488 = vld [vmem:[%s3 + $0x8c] sm:$0xf]
      %v489 = vld [vmem:[%s3 + $0x90] sm:$0xf]
      %v490 = vld [vmem:[%s3 + $0x94] sm:$0xf]
      %v491 = vld [vmem:[%s3 + $0x98] sm:$0xf]
      %v492 = vld [vmem:[%s3 + $0x9c] sm:$0xf]
      %v493 = vld [vmem:[%s3 + $0xa0] sm:$0xf]
      %v494 = vld [vmem:[%s3 + $0xa4] sm:$0xf]
      %v495 = vld [vmem:[%s3 + $0xa8] sm:$0xf]
      %v496 = vld [vmem:[%s3 + $0xac] sm:$0xf]
      %v497 = vld [vmem:[%s3 + $0xb0] sm:$0xf]
      %v498 = vld [vmem:[%s3 + $0xb4] sm:$0xf]
      %v499 = vld [vmem:[%s3 + $0xb8] sm:$0xf]
      %v500 = vld [vmem:[%s3 + $0xbc] sm:$0xf]
      %v501 = vld [vmem:[%s3 + $0xc0] sm:$0xf]
      %v502 = vld [vmem:[%s3 + $0xc4] sm:$0xf]
      %v503 = vld [vmem:[%s3 + $0xc8] sm:$0xf]
      %v504 = vld [vmem:[%s3 + $0xcc] sm:$0xf]
      %v505 = vld [vmem:[%s3 + $0xd0] sm:$0xf]
      %v506 = vld [vmem:[%s3 + $0xd4] sm:$0xf]
      %v507 = vld [vmem:[%s3 + $0xd8] sm:$0xf]
      %v508 = vld [vmem:[%s3 + $0xdc] sm:$0xf]
      %v509 = vld [vmem:[%s3 + $0xe0] sm:$0xf]
      %v510 = vld [vmem:[%s3 + $0xe4] sm:$0xf]
      %v511 = vld [vmem:[%s3 + $0xe8] sm:$0xf]
      %v512 = vld [vmem:[%s3 + $0xec] sm:$0xf]
      %v513 = vld [vmem:[%s3 + $0xf0] sm:$0xf]
      %v514 = vld [vmem:[%s3 + $0xf4] sm:$0xf]
      %v515 = vld [vmem:[%s3 + $0xf8] sm:$0xf]
      %v516 = vld [vmem:[%s3 + $0xfc] sm:$0xf]
      %v517 = vld [vmem:[%s3 + $0x100] sm:$0xf]
      %v518 = vld [vmem:[%s3 + $0x104] sm:$0xf]
      %v519 = vld [vmem:[%s3 + $0x108] sm:$0xf]
      %v520 = vld [vmem:[%s3 + $0x10c] sm:$0xf]
      %v521 = vld [vmem:[%s3 + $0x110] sm:$0xf]
      %v522 = vld [vmem:[%s3 + $0x114] sm:$0xf]
      %v523 = vld [vmem:[%s3 + $0x118] sm:$0xf]
      %v524 = vld [vmem:[%s3 + $0x11c] sm:$0xf]
      %v525 = vld [vmem:[%s3 + $0x120] sm:$0xf]
      %v526 = vld [vmem:[%s3 + $0x124] sm:$0xf]
      %v527 = vld [vmem:[%s3 + $0x128] sm:$0xf]
      %v528 = vld [vmem:[%s3 + $0x12c] sm:$0xf]
      %v529 = vld [vmem:[%s3 + $0x130] sm:$0xf]
      %v530 = vld [vmem:[%s3 + $0x134] sm:$0xf]
      %v531 = vld [vmem:[%s3 + $0x138] sm:$0xf]
      %v532 = vld [vmem:[%s3 + $0x13c] sm:$0xf]
      %v533 = vld [vmem:[%s3 + $0x140] sm:$0xf]
      %v534 = vld [vmem:[%s3 + $0x144] sm:$0xf]
      %v535 = vld [vmem:[%s3 + $0x148] sm:$0xf]
      %v536 = vld [vmem:[%s3 + $0x14c] sm:$0xf]
      %v537 = vld [vmem:[%s3 + $0x150] sm:$0xf]
      %v538 = vld [vmem:[%s3 + $0x154] sm:$0xf]
      %v539 = vld [vmem:[%s3 + $0x158] sm:$0xf]
      %v540 = vld [vmem:[%s3 + $0x15c] sm:$0xf]
      %v541 = vld [vmem:[%s3 + $0x160] sm:$0xf]
      %v542 = vld [vmem:[%s3 + $0x164] sm:$0xf]
      %v543 = vld [vmem:[%s3 + $0x168] sm:$0xf]
      %v544 = vld [vmem:[%s3 + $0x16c] sm:$0xf]
      %v545 = vld [vmem:[%s3 + $0x170] sm:$0xf]
      %v546 = vld [vmem:[%s3 + $0x174] sm:$0xf]
      %v547 = vld [vmem:[%s3 + $0x178] sm:$0xf]
      %v548 = vld [vmem:[%s3 + $0x17c] sm:$0xf]
      %v549 = vld [vmem:[%s4] sm:$0x1]
      %v551 = vperm.slane %v549, 0
      %v649 = vunpack.c.l.b16 %v453
      %v650 = vunpack.c.l.b16 %v454
      %v651 = vunpack.c.l.b16 %v455
      %v652 = vunpack.c.l.b16 %v456
      %v653 = vunpack.c.l.b16 %v457
      %v654 = vunpack.c.l.b16 %v458
      %v655 = vunpack.c.l.b16 %v459
      %v656 = vunpack.c.l.b16 %v460
      %v657 = vunpack.c.l.b16 %v461
      %v658 = vunpack.c.l.b16 %v462
      %v659 = vunpack.c.l.b16 %v463
      %v660 = vunpack.c.l.b16 %v464
      %v661 = vunpack.c.l.b16 %v465
      %v662 = vunpack.c.l.b16 %v466
      %v663 = vunpack.c.l.b16 %v467
      %v664 = vunpack.c.l.b16 %v468
      %v665 = vunpack.c.l.b16 %v469
      %v666 = vunpack.c.l.b16 %v470
      %v667 = vunpack.c.l.b16 %v471
      %v668 = vunpack.c.l.b16 %v472
      %v669 = vunpack.c.l.b16 %v473
      %v670 = vunpack.c.l.b16 %v474
      %v671 = vunpack.c.l.b16 %v475
      %v672 = vunpack.c.l.b16 %v476
      %v673 = vunpack.c.l.b16 %v477
      %v674 = vunpack.c.l.b16 %v478
      %v675 = vunpack.c.l.b16 %v479
      %v676 = vunpack.c.l.b16 %v480
      %v677 = vunpack.c.l.b16 %v481
      %v678 = vunpack.c.l.b16 %v482
      %v679 = vunpack.c.l.b16 %v483
      %v680 = vunpack.c.l.b16 %v484
      %v681 = vunpack.c.l.b16 %v485
      %v682 = vunpack.c.l.b16 %v486
      %v683 = vunpack.c.l.b16 %v487
      %v684 = vunpack.c.l.b16 %v488
      %v685 = vunpack.c.l.b16 %v489
      %v686 = vunpack.c.l.b16 %v490
      %v687 = vunpack.c.l.b16 %v491
      %v688 = vunpack.c.l.b16 %v492
      %v689 = vunpack.c.l.b16 %v493
      %v690 = vunpack.c.l.b16 %v494
      %v691 = vunpack.c.l.b16 %v495
      %v692 = vunpack.c.l.b16 %v496
      %v693 = vunpack.c.l.b16 %v497
      %v694 = vunpack.c.l.b16 %v498
      %v695 = vunpack.c.l.b16 %v499
      %v696 = vunpack.c.l.b16 %v500
      %v697 = vunpack.c.l.b16 %v501
      %v698 = vunpack.c.l.b16 %v502
      %v699 = vunpack.c.l.b16 %v503
      %v700 = vunpack.c.l.b16 %v504
      %v701 = vunpack.c.l.b16 %v505
      %v702 = vunpack.c.l.b16 %v506
      %v703 = vunpack.c.l.b16 %v507
      %v704 = vunpack.c.l.b16 %v508
      %v705 = vunpack.c.l.b16 %v509
      %v706 = vunpack.c.l.b16 %v510
      %v707 = vunpack.c.l.b16 %v511
      %v708 = vunpack.c.l.b16 %v512
      %v709 = vunpack.c.l.b16 %v513
      %v710 = vunpack.c.l.b16 %v514
      %v711 = vunpack.c.l.b16 %v515
      %v712 = vunpack.c.l.b16 %v516
      %v713 = vunpack.c.l.b16 %v517
      %v714 = vunpack.c.l.b16 %v518
      %v715 = vunpack.c.l.b16 %v519
      %v716 = vunpack.c.l.b16 %v520
      %v717 = vunpack.c.l.b16 %v521
      %v718 = vunpack.c.l.b16 %v522
      %v719 = vunpack.c.l.b16 %v523
      %v720 = vunpack.c.l.b16 %v524
      %v721 = vunpack.c.l.b16 %v525
      %v722 = vunpack.c.l.b16 %v526
      %v723 = vunpack.c.l.b16 %v527
      %v724 = vunpack.c.l.b16 %v528
      %v725 = vunpack.c.l.b16 %v529
      %v726 = vunpack.c.l.b16 %v530
      %v727 = vunpack.c.l.b16 %v531
      %v728 = vunpack.c.l.b16 %v532
      %v729 = vunpack.c.l.b16 %v533
      %v730 = vunpack.c.l.b16 %v534
      %v731 = vunpack.c.l.b16 %v535
      %v732 = vunpack.c.l.b16 %v536
      %v733 = vunpack.c.l.b16 %v537
      %v734 = vunpack.c.l.b16 %v538
      %v735 = vunpack.c.l.b16 %v539
      %v736 = vunpack.c.l.b16 %v540
      %v737 = vunpack.c.l.b16 %v541
      %v738 = vunpack.c.l.b16 %v542
      %v739 = vunpack.c.l.b16 %v543
      %v740 = vunpack.c.l.b16 %v544
      %v741 = vunpack.c.l.b16 %v545
      %v742 = vunpack.c.l.b16 %v546
      %v743 = vunpack.c.l.b16 %v547
      %v744 = vunpack.c.l.b16 %v548
      %v745 = vpack.c.b16 %v650, %v649
      %v746 = vpack.c.b16 %v652, %v651
      %v747 = vpack.c.b16 %v654, %v653
      %v748 = vpack.c.b16 %v656, %v655
      %v749 = vpack.c.b16 %v658, %v657
      %v750 = vpack.c.b16 %v660, %v659
      %v751 = vpack.c.b16 %v662, %v661
      %v752 = vpack.c.b16 %v664, %v663
      %v753 = vpack.c.b16 %v666, %v665
      %v754 = vpack.c.b16 %v668, %v667
      %v755 = vpack.c.b16 %v670, %v669
      %v756 = vpack.c.b16 %v672, %v671
      %v757 = vpack.c.b16 %v674, %v673
      %v758 = vpack.c.b16 %v676, %v675
      %v759 = vpack.c.b16 %v678, %v677
      %v760 = vpack.c.b16 %v680, %v679
      %v761 = vpack.c.b16 %v682, %v681
      %v762 = vpack.c.b16 %v684, %v683
      %v763 = vpack.c.b16 %v686, %v685
      %v764 = vpack.c.b16 %v688, %v687
      %v765 = vpack.c.b16 %v690, %v689
      %v766 = vpack.c.b16 %v692, %v691
      %v767 = vpack.c.b16 %v694, %v693
      %v768 = vpack.c.b16 %v696, %v695
      %v769 = vpack.c.b16 %v698, %v697
      %v770 = vpack.c.b16 %v700, %v699
      %v771 = vpack.c.b16 %v702, %v701
      %v772 = vpack.c.b16 %v704, %v703
      %v773 = vpack.c.b16 %v706, %v705
      %v774 = vpack.c.b16 %v708, %v707
      %v775 = vpack.c.b16 %v710, %v709
      %v776 = vpack.c.b16 %v712, %v711
      %v777 = vpack.c.b16 %v714, %v713
      %v778 = vpack.c.b16 %v716, %v715
      %v779 = vpack.c.b16 %v718, %v717
      %v780 = vpack.c.b16 %v720, %v719
      %v781 = vpack.c.b16 %v722, %v721
      %v782 = vpack.c.b16 %v724, %v723
      %v783 = vpack.c.b16 %v726, %v725
      %v784 = vpack.c.b16 %v728, %v727
      %v785 = vpack.c.b16 %v730, %v729
      %v786 = vpack.c.b16 %v732, %v731
      %v787 = vpack.c.b16 %v734, %v733
      %v788 = vpack.c.b16 %v736, %v735
      %v789 = vpack.c.b16 %v738, %v737
      %v790 = vpack.c.b16 %v740, %v739
      %v791 = vpack.c.b16 %v742, %v741
      %v792 = vpack.c.b16 %v744, %v743
      %841 = vmatpush.bf16.msra.mxu0 %v752
      %842 = vmatpush.bf16.msra.mxu0 %v751
      %843 = vmatpush.bf16.msra.mxu0 %v750
      %844 = vmatpush.bf16.msra.mxu0 %v749
      %845 = vmatpush.bf16.msra.mxu0 %v748
      %846 = vmatpush.bf16.msra.mxu0 %v747
      %847 = vmatpush.bf16.msra.mxu0 %v746
      %848 = vmatpush.bf16.msra.mxu0 %v745
      %849 = vmatmul.bf16.gmra.mxu0 %v375
      %v850 = vpop.f32.mrf.mxu0
      %v851 = vadd.f32 %v551, %v850
      %v852 = vpop.f32.mrf.mxu0
      %v853 = vadd.f32 %v551, %v852
      %854 = vmatmul.bf16.gmra.mxu0 %v381
      %v855 = vpop.f32.mrf.mxu0
      %v856 = vadd.f32 %v551, %v855
      %v857 = vpop.f32.mrf.mxu0
      %v858 = vadd.f32 %v551, %v857
      %859 = vmatmul.bf16.gmra.mxu0 %v387
      %v860 = vpop.f32.mrf.mxu0
      %v861 = vadd.f32 %v551, %v860
      %v862 = vpop.f32.mrf.mxu0
      %v863 = vadd.f32 %v551, %v862
      %864 = vmatmul.bf16.gmra.mxu0 %v393
      %v865 = vpop.f32.mrf.mxu0
      %v866 = vadd.f32 %v551, %v865
      %v867 = vpop.f32.mrf.mxu0
      %v868 = vadd.f32 %v551, %v867
      %869 = vmatmul.bf16.gmra.mxu0 %v399
      %v870 = vpop.f32.mrf.mxu0
      %v871 = vadd.f32 %v551, %v870
      %v872 = vpop.f32.mrf.mxu0
      %v873 = vadd.f32 %v551, %v872
      %874 = vmatmul.bf16.gmra.mxu0 %v405
      %v875 = vpop.f32.mrf.mxu0
      %v876 = vadd.f32 %v551, %v875
      %v877 = vpop.f32.mrf.mxu0
      %v878 = vadd.f32 %v551, %v877
      %879 = vmatmul.bf16.gmra.mxu0 %v411
      %v880 = vpop.f32.mrf.mxu0
      %v881 = vadd.f32 %v551, %v880
      %v882 = vpop.f32.mrf.mxu0
      %v883 = vadd.f32 %v551, %v882
      %884 = vmatmul.bf16.gmra.mxu0 %v417
      %v885 = vpop.f32.mrf.mxu0
      %v886 = vadd.f32 %v551, %v885
      %v887 = vpop.f32.mrf.mxu0
      %v888 = vadd.f32 %v551, %v887
      %889 = vmatmul.bf16.gmra.mxu0 %v423
      %v890 = vpop.f32.mrf.mxu0
      %v891 = vadd.f32 %v551, %v890
      %v892 = vpop.f32.mrf.mxu0
      %v893 = vadd.f32 %v551, %v892
      %894 = vmatmul.bf16.gmra.mxu0 %v429
      %v895 = vpop.f32.mrf.mxu0
      %v896 = vadd.f32 %v551, %v895
      %v897 = vpop.f32.mrf.mxu0
      %v898 = vadd.f32 %v551, %v897
      %899 = vmatmul.bf16.gmra.mxu0 %v435
      %v900 = vpop.f32.mrf.mxu0
      %v901 = vadd.f32 %v551, %v900
      %v902 = vpop.f32.mrf.mxu0
      %v903 = vadd.f32 %v551, %v902
      %904 = vmatmul.bf16.gmra.mxu0 %v441
      %v905 = vpop.f32.mrf.mxu0
      %v906 = vadd.f32 %v551, %v905
      %v907 = vpop.f32.mrf.mxu0
      %v908 = vadd.f32 %v551, %v907
      %909 = vmatmul.bf16.gmra.mxu0 %v447
      %v910 = vpop.f32.mrf.mxu0
      %v911 = vadd.f32 %v551, %v910
      %v912 = vpop.f32.mrf.mxu0
      %913 = vdwg.mxu0
      %914 = vmatpush.bf16.msra.mxu0 %v760
      %915 = vmatpush.bf16.msra.mxu0 %v759
      %916 = vmatpush.bf16.msra.mxu0 %v758
      %917 = vmatpush.bf16.msra.mxu0 %v757
      %918 = vmatpush.bf16.msra.mxu0 %v756
      %919 = vmatpush.bf16.msra.mxu0 %v755
      %920 = vmatpush.bf16.msra.mxu0 %v754
      %921 = vmatpush.bf16.msra.mxu0 %v753
      %922 = vmatmul.bf16.gmra.mxu0 %v376
      %v923 = vpop.f32.mrf.mxu0
      %v924 = vadd.f32 %v851, %v923
      %v925 = vpop.f32.mrf.mxu0
      %v926 = vadd.f32 %v853, %v925
      %927 = vmatmul.bf16.gmra.mxu0 %v382
      %v928 = vpop.f32.mrf.mxu0
      %v929 = vadd.f32 %v856, %v928
      %v930 = vpop.f32.mrf.mxu0
      %v931 = vadd.f32 %v858, %v930
      %932 = vmatmul.bf16.gmra.mxu0 %v388
      %v933 = vpop.f32.mrf.mxu0
      %v934 = vadd.f32 %v861, %v933
      %v935 = vpop.f32.mrf.mxu0
      %v936 = vadd.f32 %v863, %v935
      %937 = vmatmul.bf16.gmra.mxu0 %v394
      %v938 = vpop.f32.mrf.mxu0
      %v939 = vadd.f32 %v866, %v938
      %v940 = vpop.f32.mrf.mxu0
      %v941 = vadd.f32 %v868, %v940
      %942 = vmatmul.bf16.gmra.mxu0 %v400
      %v943 = vpop.f32.mrf.mxu0
      %v944 = vadd.f32 %v871, %v943
      %v945 = vpop.f32.mrf.mxu0
      %v946 = vadd.f32 %v873, %v945
      %947 = vmatmul.bf16.gmra.mxu0 %v406
      %v948 = vpop.f32.mrf.mxu0
      %v949 = vadd.f32 %v876, %v948
      %v950 = vpop.f32.mrf.mxu0
      %v951 = vadd.f32 %v878, %v950
      %952 = vmatmul.bf16.gmra.mxu0 %v412
      %v953 = vpop.f32.mrf.mxu0
      %v954 = vadd.f32 %v881, %v953
      %v955 = vpop.f32.mrf.mxu0
      %v956 = vadd.f32 %v883, %v955
      %957 = vmatmul.bf16.gmra.mxu0 %v418
      %v958 = vpop.f32.mrf.mxu0
      %v959 = vadd.f32 %v886, %v958
      %v960 = vpop.f32.mrf.mxu0
      %v961 = vadd.f32 %v888, %v960
      %962 = vmatmul.bf16.gmra.mxu0 %v424
      %v963 = vpop.f32.mrf.mxu0
      %v964 = vadd.f32 %v891, %v963
      %v965 = vpop.f32.mrf.mxu0
      %v966 = vadd.f32 %v893, %v965
      %967 = vmatmul.bf16.gmra.mxu0 %v430
      %v968 = vpop.f32.mrf.mxu0
      %v969 = vadd.f32 %v896, %v968
      %v970 = vpop.f32.mrf.mxu0
      %v971 = vadd.f32 %v898, %v970
      %972 = vmatmul.bf16.gmra.mxu0 %v436
      %v973 = vpop.f32.mrf.mxu0
      %v974 = vadd.f32 %v901, %v973
      %v975 = vpop.f32.mrf.mxu0
      %v976 = vadd.f32 %v903, %v975
      %977 = vmatmul.bf16.gmra.mxu0 %v442
      %v978 = vpop.f32.mrf.mxu0
      %v979 = vadd.f32 %v906, %v978
      %v980 = vpop.f32.mrf.mxu0
      %v981 = vadd.f32 %v908, %v980
      %982 = vmatmul.bf16.gmra.mxu0 %v448
      %v983 = vpop.f32.mrf.mxu0
      %v984 = vadd.f32 %v911, %v983
      %v985 = vpop.f32.mrf.mxu0
      %986 = vdwg.mxu0
      %987 = vmatpush.bf16.msra.mxu0 %v768
      %988 = vmatpush.bf16.msra.mxu0 %v767
      %989 = vmatpush.bf16.msra.mxu0 %v766
      %990 = vmatpush.bf16.msra.mxu0 %v765
      %991 = vmatpush.bf16.msra.mxu0 %v764
      %992 = vmatpush.bf16.msra.mxu0 %v763
      %993 = vmatpush.bf16.msra.mxu0 %v762
      %994 = vmatpush.bf16.msra.mxu0 %v761
      %995 = vmatmul.bf16.gmra.mxu0 %v377
      %v996 = vpop.f32.mrf.mxu0
      %v997 = vadd.f32 %v924, %v996
      %v998 = vpop.f32.mrf.mxu0
      %v999 = vadd.f32 %v926, %v998
      %1000 = vmatmul.bf16.gmra.mxu0 %v383
      %v1001 = vpop.f32.mrf.mxu0
      %v1002 = vadd.f32 %v929, %v1001
      %v1003 = vpop.f32.mrf.mxu0
      %v1004 = vadd.f32 %v931, %v1003
      %1005 = vmatmul.bf16.gmra.mxu0 %v389
      %v1006 = vpop.f32.mrf.mxu0
      %v1007 = vadd.f32 %v934, %v1006
      %v1008 = vpop.f32.mrf.mxu0
      %v1009 = vadd.f32 %v936, %v1008
      %1010 = vmatmul.bf16.gmra.mxu0 %v395
      %v1011 = vpop.f32.mrf.mxu0
      %v1012 = vadd.f32 %v939, %v1011
      %v1013 = vpop.f32.mrf.mxu0
      %v1014 = vadd.f32 %v941, %v1013
      %1015 = vmatmul.bf16.gmra.mxu0 %v401
      %v1016 = vpop.f32.mrf.mxu0
      %v1017 = vadd.f32 %v944, %v1016
      %v1018 = vpop.f32.mrf.mxu0
      %v1019 = vadd.f32 %v946, %v1018
      %1020 = vmatmul.bf16.gmra.mxu0 %v407
      %v1021 = vpop.f32.mrf.mxu0
      %v1022 = vadd.f32 %v949, %v1021
      %v1023 = vpop.f32.mrf.mxu0
      %v1024 = vadd.f32 %v951, %v1023
      %1025 = vmatmul.bf16.gmra.mxu0 %v413
      %v1026 = vpop.f32.mrf.mxu0
      %v1027 = vadd.f32 %v954, %v1026
      %v1028 = vpop.f32.mrf.mxu0
      %v1029 = vadd.f32 %v956, %v1028
      %1030 = vmatmul.bf16.gmra.mxu0 %v419
      %v1031 = vpop.f32.mrf.mxu0
      %v1032 = vadd.f32 %v959, %v1031
      %v1033 = vpop.f32.mrf.mxu0
      %v1034 = vadd.f32 %v961, %v1033
      %1035 = vmatmul.bf16.gmra.mxu0 %v425
      %v1036 = vpop.f32.mrf.mxu0
      %v1037 = vadd.f32 %v964, %v1036
      %v1038 = vpop.f32.mrf.mxu0
      %v1039 = vadd.f32 %v966, %v1038
      %1040 = vmatmul.bf16.gmra.mxu0 %v431
      %v1041 = vpop.f32.mrf.mxu0
      %v1042 = vadd.f32 %v969, %v1041
      %v1043 = vpop.f32.mrf.mxu0
      %v1044 = vadd.f32 %v971, %v1043
      %1045 = vmatmul.bf16.gmra.mxu0 %v437
      %v1046 = vpop.f32.mrf.mxu0
      %v1047 = vadd.f32 %v974, %v1046
      %v1048 = vpop.f32.mrf.mxu0
      %v1049 = vadd.f32 %v976, %v1048
      %1050 = vmatmul.bf16.gmra.mxu0 %v443
      %v1051 = vpop.f32.mrf.mxu0
      %v1052 = vadd.f32 %v979, %v1051
      %v1053 = vpop.f32.mrf.mxu0
      %v1054 = vadd.f32 %v981, %v1053
      %1055 = vmatmul.bf16.gmra.mxu0 %v449
      %v1056 = vpop.f32.mrf.mxu0
      %v1057 = vadd.f32 %v984, %v1056
      %v1058 = vpop.f32.mrf.mxu0
      %1059 = vdwg.mxu0
      %1060 = vmatpush.bf16.msra.mxu0 %v776
      %1061 = vmatpush.bf16.msra.mxu0 %v775
      %1062 = vmatpush.bf16.msra.mxu0 %v774
      %1063 = vmatpush.bf16.msra.mxu0 %v773
      %1064 = vmatpush.bf16.msra.mxu0 %v772
      %1065 = vmatpush.bf16.msra.mxu0 %v771
      %1066 = vmatpush.bf16.msra.mxu0 %v770
      %1067 = vmatpush.bf16.msra.mxu0 %v769
      %1068 = vmatmul.bf16.gmra.mxu0 %v378
      %v1069 = vpop.f32.mrf.mxu0
      %v1070 = vadd.f32 %v997, %v1069
      %v1071 = vpop.f32.mrf.mxu0
      %v1072 = vadd.f32 %v999, %v1071
      %1073 = vmatmul.bf16.gmra.mxu0 %v384
      %v1074 = vpop.f32.mrf.mxu0
      %v1075 = vadd.f32 %v1002, %v1074
      %v1076 = vpop.f32.mrf.mxu0
      %v1077 = vadd.f32 %v1004, %v1076
      %1078 = vmatmul.bf16.gmra.mxu0 %v390
      %v1079 = vpop.f32.mrf.mxu0
      %v1080 = vadd.f32 %v1007, %v1079
      %v1081 = vpop.f32.mrf.mxu0
      %v1082 = vadd.f32 %v1009, %v1081
      %1083 = vmatmul.bf16.gmra.mxu0 %v396
      %v1084 = vpop.f32.mrf.mxu0
      %v1085 = vadd.f32 %v1012, %v1084
      %v1086 = vpop.f32.mrf.mxu0
      %v1087 = vadd.f32 %v1014, %v1086
      %1088 = vmatmul.bf16.gmra.mxu0 %v402
      %v1089 = vpop.f32.mrf.mxu0
      %v1090 = vadd.f32 %v1017, %v1089
      %v1091 = vpop.f32.mrf.mxu0
      %v1092 = vadd.f32 %v1019, %v1091
      %1093 = vmatmul.bf16.gmra.mxu0 %v408
      %v1094 = vpop.f32.mrf.mxu0
      %v1095 = vadd.f32 %v1022, %v1094
      %v1096 = vpop.f32.mrf.mxu0
      %v1097 = vadd.f32 %v1024, %v1096
      %1098 = vmatmul.bf16.gmra.mxu0 %v414
      %v1099 = vpop.f32.mrf.mxu0
      %v1100 = vadd.f32 %v1027, %v1099
      %v1101 = vpop.f32.mrf.mxu0
      %v1102 = vadd.f32 %v1029, %v1101
      %1103 = vmatmul.bf16.gmra.mxu0 %v420
      %v1104 = vpop.f32.mrf.mxu0
      %v1105 = vadd.f32 %v1032, %v1104
      %v1106 = vpop.f32.mrf.mxu0
      %v1107 = vadd.f32 %v1034, %v1106
      %1108 = vmatmul.bf16.gmra.mxu0 %v426
      %v1109 = vpop.f32.mrf.mxu0
      %v1110 = vadd.f32 %v1037, %v1109
      %v1111 = vpop.f32.mrf.mxu0
      %v1112 = vadd.f32 %v1039, %v1111
      %1113 = vmatmul.bf16.gmra.mxu0 %v432
      %v1114 = vpop.f32.mrf.mxu0
      %v1115 = vadd.f32 %v1042, %v1114
      %v1116 = vpop.f32.mrf.mxu0
      %v1117 = vadd.f32 %v1044, %v1116
      %1118 = vmatmul.bf16.gmra.mxu0 %v438
      %v1119 = vpop.f32.mrf.mxu0
      %v1120 = vadd.f32 %v1047, %v1119
      %v1121 = vpop.f32.mrf.mxu0
      %v1122 = vadd.f32 %v1049, %v1121
      %1123 = vmatmul.bf16.gmra.mxu0 %v444
      %v1124 = vpop.f32.mrf.mxu0
      %v1125 = vadd.f32 %v1052, %v1124
      %v1126 = vpop.f32.mrf.mxu0
      %v1127 = vadd.f32 %v1054, %v1126
      %1128 = vmatmul.bf16.gmra.mxu0 %v450
      %v1129 = vpop.f32.mrf.mxu0
      %v1130 = vadd.f32 %v1057, %v1129
      %v1131 = vpop.f32.mrf.mxu0
      %1132 = vdwg.mxu0
      %1133 = vmatpush.bf16.msra.mxu0 %v784
      %1134 = vmatpush.bf16.msra.mxu0 %v783
      %1135 = vmatpush.bf16.msra.mxu0 %v782
      %1136 = vmatpush.bf16.msra.mxu0 %v781
      %1137 = vmatpush.bf16.msra.mxu0 %v780
      %1138 = vmatpush.bf16.msra.mxu0 %v779
      %1139 = vmatpush.bf16.msra.mxu0 %v778
      %1140 = vmatpush.bf16.msra.mxu0 %v777
      %1141 = vmatmul.bf16.gmra.mxu0 %v379
      %v1142 = vpop.f32.mrf.mxu0
      %v1143 = vadd.f32 %v1070, %v1142
      %v1144 = vpop.f32.mrf.mxu0
      %v1145 = vadd.f32 %v1072, %v1144
      %1146 = vmatmul.bf16.gmra.mxu0 %v385
      %v1147 = vpop.f32.mrf.mxu0
      %v1148 = vadd.f32 %v1075, %v1147
      %v1149 = vpop.f32.mrf.mxu0
      %v1150 = vadd.f32 %v1077, %v1149
      %1151 = vmatmul.bf16.gmra.mxu0 %v391
      %v1152 = vpop.f32.mrf.mxu0
      %v1153 = vadd.f32 %v1080, %v1152
      %v1154 = vpop.f32.mrf.mxu0
      %v1155 = vadd.f32 %v1082, %v1154
      %1156 = vmatmul.bf16.gmra.mxu0 %v397
      %v1157 = vpop.f32.mrf.mxu0
      %v1158 = vadd.f32 %v1085, %v1157
      %v1159 = vpop.f32.mrf.mxu0
      %v1160 = vadd.f32 %v1087, %v1159
      %1161 = vmatmul.bf16.gmra.mxu0 %v403
      %v1162 = vpop.f32.mrf.mxu0
      %v1163 = vadd.f32 %v1090, %v1162
      %v1164 = vpop.f32.mrf.mxu0
      %v1165 = vadd.f32 %v1092, %v1164
      %1166 = vmatmul.bf16.gmra.mxu0 %v409
      %v1167 = vpop.f32.mrf.mxu0
      %v1168 = vadd.f32 %v1095, %v1167
      %v1169 = vpop.f32.mrf.mxu0
      %v1170 = vadd.f32 %v1097, %v1169
      %1171 = vmatmul.bf16.gmra.mxu0 %v415
      %v1172 = vpop.f32.mrf.mxu0
      %v1173 = vadd.f32 %v1100, %v1172
      %v1174 = vpop.f32.mrf.mxu0
      %v1175 = vadd.f32 %v1102, %v1174
      %1176 = vmatmul.bf16.gmra.mxu0 %v421
      %v1177 = vpop.f32.mrf.mxu0
      %v1178 = vadd.f32 %v1105, %v1177
      %v1179 = vpop.f32.mrf.mxu0
      %v1180 = vadd.f32 %v1107, %v1179
      %1181 = vmatmul.bf16.gmra.mxu0 %v427
      %v1182 = vpop.f32.mrf.mxu0
      %v1183 = vadd.f32 %v1110, %v1182
      %v1184 = vpop.f32.mrf.mxu0
      %v1185 = vadd.f32 %v1112, %v1184
      %1186 = vmatmul.bf16.gmra.mxu0 %v433
      %v1187 = vpop.f32.mrf.mxu0
      %v1188 = vadd.f32 %v1115, %v1187
      %v1189 = vpop.f32.mrf.mxu0
      %v1190 = vadd.f32 %v1117, %v1189
      %1191 = vmatmul.bf16.gmra.mxu0 %v439
      %v1192 = vpop.f32.mrf.mxu0
      %v1193 = vadd.f32 %v1120, %v1192
      %v1194 = vpop.f32.mrf.mxu0
      %v1195 = vadd.f32 %v1122, %v1194
      %1196 = vmatmul.bf16.gmra.mxu0 %v445
      %v1197 = vpop.f32.mrf.mxu0
      %v1198 = vadd.f32 %v1125, %v1197
      %v1199 = vpop.f32.mrf.mxu0
      %v1200 = vadd.f32 %v1127, %v1199
      %1201 = vmatmul.bf16.gmra.mxu0 %v451
      %v1202 = vpop.f32.mrf.mxu0
      %v1203 = vadd.f32 %v1130, %v1202
      %v1204 = vpop.f32.mrf.mxu0
      %1205 = vdwg.mxu0
      %1206 = vmatpush.bf16.msra.mxu0 %v792
      %1207 = vmatpush.bf16.msra.mxu0 %v791
      %1208 = vmatpush.bf16.msra.mxu0 %v790
      %1209 = vmatpush.bf16.msra.mxu0 %v789
      %1210 = vmatpush.bf16.msra.mxu0 %v788
      %1211 = vmatpush.bf16.msra.mxu0 %v787
      %1212 = vmatpush.bf16.msra.mxu0 %v786
      %1213 = vmatpush.bf16.msra.mxu0 %v785
      %1214 = vmatmul.bf16.gmra.mxu0 %v380
      %v1215 = vpop.f32.mrf.mxu0
      %v1216 = vadd.f32 %v1143, %v1215
      %v1217 = vpop.f32.mrf.mxu0
      %v1218 = vadd.f32 %v1145, %v1217
      %1219 = vmatmul.bf16.gmra.mxu0 %v386
      %v1220 = vpop.f32.mrf.mxu0
      %v1221 = vadd.f32 %v1148, %v1220
      %v1222 = vpop.f32.mrf.mxu0
      %v1223 = vadd.f32 %v1150, %v1222
      %1224 = vmatmul.bf16.gmra.mxu0 %v392
      %v1225 = vpop.f32.mrf.mxu0
      %v1226 = vadd.f32 %v1153, %v1225
      %v1227 = vpop.f32.mrf.mxu0
      %v1228 = vadd.f32 %v1155, %v1227
      %1229 = vmatmul.bf16.gmra.mxu0 %v398
      %v1230 = vpop.f32.mrf.mxu0
      %v1231 = vadd.f32 %v1158, %v1230
      %v1232 = vpop.f32.mrf.mxu0
      %v1233 = vadd.f32 %v1160, %v1232
      %1234 = vmatmul.bf16.gmra.mxu0 %v404
      %v1235 = vpop.f32.mrf.mxu0
      %v1236 = vadd.f32 %v1163, %v1235
      %v1237 = vpop.f32.mrf.mxu0
      %v1238 = vadd.f32 %v1165, %v1237
      %1239 = vmatmul.bf16.gmra.mxu0 %v410
      %v1240 = vpop.f32.mrf.mxu0
      %v1241 = vadd.f32 %v1168, %v1240
      %v1242 = vpop.f32.mrf.mxu0
      %v1243 = vadd.f32 %v1170, %v1242
      %1244 = vmatmul.bf16.gmra.mxu0 %v416
      %v1245 = vpop.f32.mrf.mxu0
      %v1246 = vadd.f32 %v1173, %v1245
      %v1247 = vpop.f32.mrf.mxu0
      %v1248 = vadd.f32 %v1175, %v1247
      %1249 = vmatmul.bf16.gmra.mxu0 %v422
      %v1250 = vpop.f32.mrf.mxu0
      %v1251 = vadd.f32 %v1178, %v1250
      %v1252 = vpop.f32.mrf.mxu0
      %v1253 = vadd.f32 %v1180, %v1252
      %1254 = vmatmul.bf16.gmra.mxu0 %v428
      %v1255 = vpop.f32.mrf.mxu0
      %v1256 = vadd.f32 %v1183, %v1255
      %v1257 = vpop.f32.mrf.mxu0
      %v1258 = vadd.f32 %v1185, %v1257
      %1259 = vmatmul.bf16.gmra.mxu0 %v434
      %v1260 = vpop.f32.mrf.mxu0
      %v1261 = vadd.f32 %v1188, %v1260
      %v1262 = vpop.f32.mrf.mxu0
      %v1263 = vadd.f32 %v1190, %v1262
      %1264 = vmatmul.bf16.gmra.mxu0 %v440
      %v1265 = vpop.f32.mrf.mxu0
      %v1266 = vadd.f32 %v1193, %v1265
      %v1267 = vpop.f32.mrf.mxu0
      %v1268 = vadd.f32 %v1195, %v1267
      %1269 = vmatmul.bf16.gmra.mxu0 %v446
      %v1270 = vpop.f32.mrf.mxu0
      %v1271 = vadd.f32 %v1198, %v1270
      %v1272 = vpop.f32.mrf.mxu0
      %v1273 = vadd.f32 %v1200, %v1272
      %1274 = vmatmul.bf16.gmra.mxu0 %v452
      %v1275 = vpop.f32.mrf.mxu0
      %v1276 = vadd.f32 %v1203, %v1275
      %v1277 = vpop.f32.mrf.mxu0
      %1278 = vdwg.mxu0
      %v1279 = vld [vmem:[%s2] sm:$0x1]
      %vm1305 = vcmask 1040384
      %v1306 = vrot.slane %v1216, 7
      %v1307 = vrot.slane %v1218, 7
      %v1308 = vsel %vm1305, %v1306, %v1307
      %v1309 = vrot.slane %v1221, 7
      %v1310 = vsel %vm1305, %v1307, %v1309
      %v1311 = vrot.slane %v1223, 7
      %v1312 = vsel %vm1305, %v1309, %v1311
      %v1313 = vrot.slane %v1226, 7
      %v1314 = vsel %vm1305, %v1311, %v1313
      %v1315 = vrot.slane %v1228, 7
      %v1316 = vsel %vm1305, %v1313, %v1315
      %v1317 = vrot.slane %v1231, 7
      %v1318 = vsel %vm1305, %v1315, %v1317
      %v1319 = vrot.slane %v1233, 7
      %v1320 = vsel %vm1305, %v1317, %v1319
      %v1321 = vrot.slane %v1236, 7
      %v1322 = vsel %vm1305, %v1319, %v1321
      %v1323 = vrot.slane %v1238, 7
      %v1324 = vsel %vm1305, %v1321, %v1323
      %v1325 = vrot.slane %v1241, 7
      %v1326 = vsel %vm1305, %v1323, %v1325
      %v1327 = vrot.slane %v1243, 7
      %v1328 = vsel %vm1305, %v1325, %v1327
      %v1329 = vrot.slane %v1246, 7
      %v1330 = vsel %vm1305, %v1327, %v1329
      %v1331 = vrot.slane %v1248, 7
      %v1332 = vsel %vm1305, %v1329, %v1331
      %v1333 = vrot.slane %v1251, 7
      %v1334 = vsel %vm1305, %v1331, %v1333
      %v1335 = vrot.slane %v1253, 7
      %v1336 = vsel %vm1305, %v1333, %v1335
      %v1337 = vrot.slane %v1256, 7
      %v1338 = vsel %vm1305, %v1335, %v1337
      %v1339 = vrot.slane %v1258, 7
      %v1340 = vsel %vm1305, %v1337, %v1339
      %v1341 = vrot.slane %v1261, 7
      %v1342 = vsel %vm1305, %v1339, %v1341
      %v1343 = vrot.slane %v1263, 7
      %v1344 = vsel %vm1305, %v1341, %v1343
      %v1345 = vrot.slane %v1266, 7
      %v1346 = vsel %vm1305, %v1343, %v1345
      %v1347 = vrot.slane %v1268, 7
      %v1348 = vsel %vm1305, %v1345, %v1347
      %v1349 = vrot.slane %v1271, 7
      %v1350 = vsel %vm1305, %v1347, %v1349
      %v1351 = vrot.slane %v1273, 7
      %v1352 = vsel %vm1305, %v1349, %v1351
      %v1353 = vrot.slane %v1276, 7
      %v1354 = vsel %vm1305, %v1351, %v1353
      %v1380 = vsel %vm1305, %v1279, %v1306
      %v1381 = vld [vmem:[%s1] sm:$0xff]
      %v1382 = vld [vmem:[%s1 + $0x8] sm:$0xff]
      %v1383 = vld [vmem:[%s1 + $0x10] sm:$0xff]
      %v1384 = vld [vmem:[%s1 + $0x18] sm:$0xff]
      %v1385 = vld [vmem:[%s1 + $0x20] sm:$0xff]
      %v1386 = vld [vmem:[%s1 + $0x28] sm:$0xff]
      %v1387 = vld [vmem:[%s1 + $0x30] sm:$0xff]
      %v1388 = vld [vmem:[%s1 + $0x38] sm:$0xff]
      %v1389 = vld [vmem:[%s1 + $0x40] sm:$0xff]
      %v1390 = vld [vmem:[%s1 + $0x48] sm:$0xff]
      %v1391 = vld [vmem:[%s1 + $0x50] sm:$0xff]
      %v1392 = vld [vmem:[%s1 + $0x58] sm:$0xff]
      %v1393 = vld [vmem:[%s1 + $0x60] sm:$0xff]
      %v1394 = vld [vmem:[%s1 + $0x68] sm:$0xff]
      %v1395 = vld [vmem:[%s1 + $0x70] sm:$0xff]
      %v1396 = vld [vmem:[%s1 + $0x78] sm:$0xff]
      %v1397 = vld [vmem:[%s1 + $0x80] sm:$0xff]
      %v1398 = vld [vmem:[%s1 + $0x88] sm:$0xff]
      %v1399 = vld [vmem:[%s1 + $0x90] sm:$0xff]
      %v1400 = vld [vmem:[%s1 + $0x98] sm:$0xff]
      %v1401 = vld [vmem:[%s1 + $0xa0] sm:$0xff]
      %v1402 = vld [vmem:[%s1 + $0xa8] sm:$0xff]
      %v1403 = vld [vmem:[%s1 + $0xb0] sm:$0xff]
      %v1404 = vld [vmem:[%s1 + $0xb8] sm:$0xff]
      %v1405 = vld [vmem:[%s1 + $0xc0] sm:$0x1f]
      %v1406 = vadd.f32 %v1380, %v1381
      %v1407 = vadd.f32 %v1308, %v1382
      %v1408 = vadd.f32 %v1310, %v1383
      %v1409 = vadd.f32 %v1312, %v1384
      %v1410 = vadd.f32 %v1314, %v1385
      %v1411 = vadd.f32 %v1316, %v1386
      %v1412 = vadd.f32 %v1318, %v1387
      %v1413 = vadd.f32 %v1320, %v1388
      %v1414 = vadd.f32 %v1322, %v1389
      %v1415 = vadd.f32 %v1324, %v1390
      %v1416 = vadd.f32 %v1326, %v1391
      %v1417 = vadd.f32 %v1328, %v1392
      %v1418 = vadd.f32 %v1330, %v1393
      %v1419 = vadd.f32 %v1332, %v1394
      %v1420 = vadd.f32 %v1334, %v1395
      %v1421 = vadd.f32 %v1336, %v1396
      %v1422 = vadd.f32 %v1338, %v1397
      %v1423 = vadd.f32 %v1340, %v1398
      %v1424 = vadd.f32 %v1342, %v1399
      %v1425 = vadd.f32 %v1344, %v1400
      %v1426 = vadd.f32 %v1346, %v1401
      %v1427 = vadd.f32 %v1348, %v1402
      %v1428 = vadd.f32 %v1350, %v1403
      %v1429 = vadd.f32 %v1352, %v1404
      %v1430 = vadd.f32 %v1354, %v1405
      %vm1431 = vcmask 523264
      %1432 = vst.msk [vmem:[%s224] sm:$0xff] %vm1431, %v1406
      %1433 = vst.msk [vmem:[%s224 + $0x8] sm:$0xff] %vm1431, %v1407
      %1434 = vst.msk [vmem:[%s224 + $0x10] sm:$0xff] %vm1431, %v1408
      %1435 = vst.msk [vmem:[%s224 + $0x18] sm:$0xff] %vm1431, %v1409
      %1436 = vst.msk [vmem:[%s224 + $0x20] sm:$0xff] %vm1431, %v1410
      %1437 = vst.msk [vmem:[%s224 + $0x28] sm:$0xff] %vm1431, %v1411
      %1438 = vst.msk [vmem:[%s224 + $0x30] sm:$0xff] %vm1431, %v1412
      %1439 = vst.msk [vmem:[%s224 + $0x38] sm:$0xff] %vm1431, %v1413
      %1440 = vst.msk [vmem:[%s224 + $0x40] sm:$0xff] %vm1431, %v1414
      %1441 = vst.msk [vmem:[%s224 + $0x48] sm:$0xff] %vm1431, %v1415
      %1442 = vst.msk [vmem:[%s224 + $0x50] sm:$0xff] %vm1431, %v1416
      %1443 = vst.msk [vmem:[%s224 + $0x58] sm:$0xff] %vm1431, %v1417
      %1444 = vst.msk [vmem:[%s224 + $0x60] sm:$0xff] %vm1431, %v1418
      %1445 = vst.msk [vmem:[%s224 + $0x68] sm:$0xff] %vm1431, %v1419
      %1446 = vst.msk [vmem:[%s224 + $0x70] sm:$0xff] %vm1431, %v1420
      %1447 = vst.msk [vmem:[%s224 + $0x78] sm:$0xff] %vm1431, %v1421
      %1448 = vst.msk [vmem:[%s224 + $0x80] sm:$0xff] %vm1431, %v1422
      %1449 = vst.msk [vmem:[%s224 + $0x88] sm:$0xff] %vm1431, %v1423
      %1450 = vst.msk [vmem:[%s224 + $0x90] sm:$0xff] %vm1431, %v1424
      %1451 = vst.msk [vmem:[%s224 + $0x98] sm:$0xff] %vm1431, %v1425
      %1452 = vst.msk [vmem:[%s224 + $0xa0] sm:$0xff] %vm1431, %v1426
      %1453 = vst.msk [vmem:[%s224 + $0xa8] sm:$0xff] %vm1431, %v1427
      %1454 = vst.msk [vmem:[%s224 + $0xb0] sm:$0xff] %vm1431, %v1428
      %1455 = vst.msk [vmem:[%s224 + $0xb8] sm:$0xff] %vm1431, %v1429
      %vm1456 = vcmask 520192
      %1457 = vst.msk [vmem:[%s224 + $0xc0] sm:$0x1f] %vm1456, %v1430
      %p1458 = scmp.lt.s32.totalorder %s16, 1
      %s1459 = scalar_select %p1458, %s16, 1
      %s1460 = smul.addr %s1459, 25
      %s1461 = smul.addr %s1460, 8
      %s1462 = scalar_lea.vmem %s5, %s1461
      // Predicated region
      $region41: #{tpu_custom_call.1} parent=39 // pred_check
        %p1463 = pneg %p144
      $region42: #{tpu_custom_call.1} parent=39 // pred_check_branch
        %1465 = sbr.rel (%p1463) target = $region44
      $region43: #{tpu_custom_call.1} parent=39 // pred_region
        _
      $region44: #{tpu_custom_call.1} parent=39 // pred_fallthru
        _
    $region40: #{tpu_custom_call.1} parent=5 // pred_fallthru
      _
    %p1466 = scmp.le.s32.totalorder 2, %s11
    // Predicated region
    $region45: #{tpu_custom_call.1} parent=5 // pred_check
      %p1467 = pneg %p1466
    $region46: #{tpu_custom_call.1} parent=5 // pred_check_branch
      %1469 = sbr.rel (%p1467) target = $region48
    $region47: #{tpu_custom_call.1} parent=5 // pred_region
      %s1470 = ssub.s32 %s11, 2
      // Predicated region
      $region49: #{tpu_custom_call.1} parent=47 // pred_check
        %p1471 = pneg %p150
      $region50: #{tpu_custom_call.1} parent=47 // pred_check_branch
        %1473 = sbr.rel (%p1471) target = $region52
      $region51: #{tpu_custom_call.1} parent=47 // pred_region
        %p1474 = scmp.lt.s32.totalorder %s17, 1
        %s1475 = scalar_select %p1474, %s17, 1
        %s1476 = smul.addr %s1475, 25
        %s1477 = smul.addr %s1476, 8
        %s1478 = scalar_lea.vmem %s5, %s1477
      $region52: #{tpu_custom_call.1} parent=47 // pred_fallthru
        _
    $region48: #{tpu_custom_call.1} parent=5 // pred_fallthru
      _
  $region6: #{tpu_custom_call.1} parent=0 // loop_footer
    %s15 = sadd.s32 1, %s11
  $region7: #{tpu_custom_call.1} parent=0 // loop_footer_branch
    %10 = sbr.rel target = $region3
  $region8: #{tpu_custom_call.1} parent=0 // loop_exit
    _

</llo_original>
